<compile_context>
chip_gen: v6e
topology: v6e:2x2x1
jax: 0.10.0
libtpu: 0.0.40
codegen_flags: <defaults>
</compile_context>

<pallas_src>
import functools

import numpy as np
import jax
import jax.numpy as jnp
from jax import lax
from jax.experimental import pallas as pl
from jax.experimental.pallas import tpu as pltpu

RC_PERM = np.array([3, 2, 1, 0, 4], dtype=np.int64)  # A<->T, C<->G, N->N (involution)
BN_EPS = 1e-5                                        # nn.BatchNorm1d default eps


def _vmem_limit_bytes(frac=0.8, fallback=48 * 1024 * 1024):
    """Per-generation VMEM budget (~80% of physical) instead of a hard-coded 64 MiB."""
    try:
        cap = int(pltpu.get_tpu_info().vmem_capacity_bytes)
        return max(int(cap * frac), 16 * 1024 * 1024)
    except Exception:
        return fallback  # safe on v5e/v6e (128 MiB physical) and v7x (64 MiB physical)


# -----------------------------------------------------------------------------
# Pallas kernel: whole DenseResidualBlock forward, lane-dense NCL layout, VMEM-resident.
# -----------------------------------------------------------------------------
def _dense_residual_block_kernel(
    B, L, K1, K2, C_in, C_out,
    # inputs
    x_ref,                                      # [B, C_in, L]   (NCL, length on lanes)
    w1_ref, b1_ref, g1_ref, bt1_ref,            # w1: [K1, C_out, C_in]  bf16, strand-folded
    w2_ref, b2_ref, g2_ref, bt2_ref,            # w2: [K2, C_out, C_out] bf16, block-diag folded
    wa_ref, ba_ref,                             # 1x1 attention conv
    wfx_ref, wfp_ref, bf_ref, gf_ref, btf_ref,  # fusion 1x1 conv split over [x | paths]
    # outputs
    out_ref,                                    # [B, C_out, L]
):
    f32 = jnp.float32
    bf16 = jnp.bfloat16
    p1, p2 = K1 // 2, K2 // 2
    inv_n = 1.0 / float(B * L)

    def shifted(x2d, off):
        """y[:, l] = x2d[:, l + off] with zero fill ('same' halo); off is static."""
        if off == 0:
            return x2d
        c, lx = x2d.shape
        z = jnp.zeros((c, abs(off)), x2d.dtype)
        if off > 0:
            return jnp.concatenate([x2d[:, off:], z], axis=1)
        return jnp.concatenate([z, x2d[:, :lx + off]], axis=1)

    def conv_same(x2d, w_ref, K, p):
        """'same' conv1d as K accumulated MXU matmuls  W_k[C_out,C] @ x(.+k-p)[C,L]."""
        acc = None
        for k in range(K):
            y = jnp.dot(w_ref[k], shifted(x2d, k - p), preferred_element_type=f32)
            acc = y if acc is None else acc + y
        return acc

    def batch_stats(hs):
        """Per-channel mean/var over batch*length (training BN); both moments from the live h."""
        s = ss = None
        for h in hs:
            s1 = jnp.sum(h, axis=1, keepdims=True)
            s2 = jnp.sum(h * h, axis=1, keepdims=True)
            s = s1 if s is None else s + s1
            ss = s2 if ss is None else ss + s2
        mean = s * inv_n
        var = jnp.maximum(ss * inv_n - mean * mean, 0.0)   # clamp f32 cancellation
        return mean, var

    def bn_apply(h, mean, var, g_ref, bt_ref):
        scale = g_ref[...] * lax.rsqrt(var + BN_EPS)       # [C_out, 1], broadcast over lanes
        return h * scale + (bt_ref[...] - mean * scale)

    # matmul operands in bf16; accumulation, BN math and the gate stay f32
    xs = [x_ref[b].astype(bf16) for b in range(B)]

    # ---- paths: first StrandSymmetricConv (strand softmax pre-folded) + BN1 + ReLU ----
    h1 = [conv_same(xs[b], w1_ref, K1, p1) + b1_ref[...] for b in range(B)]
    m1, v1 = batch_stats(h1)
    h1 = [jnp.maximum(bn_apply(h, m1, v1, g1_ref, bt1_ref), 0.0) for h in h1]

    # ---- paths: second (grouped -> block-diagonal) StrandSymmetricConv + BN2 ----
    h2 = [conv_same(h1[b].astype(bf16), w2_ref, K2, p2) + b2_ref[...] for b in range(B)]
    m2, v2 = batch_stats(h2)
    pc = [bn_apply(h, m2, v2, g2_ref, bt2_ref) for h in h2]

    # ---- cross-path attention: 1x1 conv + sigmoid gate (reciprocal on the EUP slot) ----
    wa = wa_ref[...]
    for b in range(B):
        z = jnp.dot(wa, pc[b].astype(bf16), preferred_element_type=f32) + ba_ref[...]
        pc[b] = pc[b] * pl.reciprocal(1.0 + jnp.exp(-z), approx=True)

    # TODO(synk): edge_gate branch intentionally not emitted (forward(x, edge_input=None) path).

    # ---- dense concat [x, paths] folded into a split 1x1 fusion conv + BN3 + ReLU ----
    wfx = wfx_ref[...]
    wfp = wfp_ref[...]
    ho = [jnp.dot(wfx, xs[b], preferred_element_type=f32)
          + jnp.dot(wfp, pc[b].astype(bf16), preferred_element_type=f32)
          + bf_ref[...]
          for b in range(B)]
    m3, v3 = batch_stats(ho)
    for b in range(B):
        out_ref[b] = jnp.maximum(bn_apply(ho[b], m3, v3, gf_ref, btf_ref), 0.0)


# -----------------------------------------------------------------------------
# Parameter setup (host-side glue): torch-layout params -> fused, strand-folded kernel layout.
# -----------------------------------------------------------------------------
def _np_softmax2(sw):
    sw = np.asarray(sw, np.float64)
    e = np.exp(sw - sw.max())                  # stabilized
    return e / e.sum()


def _fold_params(params, K1, K2, C_in, C_out, cardinality):
    pch = C_out // cardinality
    perm = RC_PERM
    w1 = np.zeros((K1, C_out, C_in), np.float64)
    w2 = np.zeros((K2, C_out, C_out), np.float64)
    b1 = np.zeros((C_out, 1), np.float32)
    b2 = np.zeros((C_out, 1), np.float32)
    g1 = np.zeros((C_out, 1), np.float32)
    bt1 = np.zeros((C_out, 1), np.float32)
    g2 = np.zeros((C_out, 1), np.float32)
    bt2 = np.zeros((C_out, 1), np.float32)

    for i, pp in enumerate(params['paths']):
        sl = slice(i * pch, (i + 1) * pch)
        W1 = np.asarray(pp['w1'], np.float64)          # [pch, C_in, K1]  (torch OIK)
        W2 = np.asarray(pp['w2'], np.float64)          # [pch, pch,  K2]
        nw1 = _np_softmax2(pp['sw1'])                  # strand softmax folded into weights
        nw2 = _np_softmax2(pp['sw2'])
        for k in range(K1):
            # fwd strand tap k + rev strand (taps flipped, rc channel perm), blended
            w1[k, sl, :] = nw1[0] * W1[:, :, k] + nw1[1] * W1[:, perm, K1 - 1 - k]
        for k in range(K2):
            w2[k, sl, sl] = nw2[0] * W2[:, :, k] + nw2[1] * W2[:, perm, K2 - 1 - k]
        b1[sl, 0] = np.asarray(pp['b1'])
        b2[sl, 0] = np.asarray(pp['b2'])
        g1[sl, 0] = np.asarray(pp['g1'])
        bt1[sl, 0] = np.asarray(pp['bt1'])
        g2[sl, 0] = np.asarray(pp['g2'])
        bt2[sl, 0] = np.asarray(pp['bt2'])

    wa = np.asarray(params['wa'], np.float64)[:, :, 0]          # [C_out, C_out]
    ba = np.asarray(params['ba'], np.float32)[:, None]
    wf = np.asarray(params['wf'], np.float64)[:, :, 0]          # [C_out, C_in + C_out]
    wfx, wfp = wf[:, :C_in], wf[:, C_in:]
    bf = np.asarray(params['bf'], np.float32)[:, None]
    gf = np.asarray(params['gf'], np.float32)[:, None]
    btf = np.asarray(params['btf'], np.float32)[:, None]

    as_bf16 = lambda a: jnp.asarray(a, dtype=jnp.bfloat16)      # MXU operands
    as_f32 = lambda a: jnp.asarray(a, dtype=jnp.float32)        # biases / BN params
    return dict(
        w1=as_bf16(w1), b1=as_f32(b1), g1=as_f32(g1), bt1=as_f32(bt1),
        w2=as_bf16(w2), b2=as_f32(b2), g2=as_f32(g2), bt2=as_f32(bt2),
        wa=as_bf16(wa), ba=as_f32(ba),
        wfx=as_bf16(wfx), wfp=as_bf16(wfp), bf=as_f32(bf), gf=as_f32(gf), btf=as_f32(btf))


def dense_residual_block_pallas(x_ncl, params, kernel_size, cardinality=4):
    """Forward pass of DenseResidualBlock(x, edge_input=None), single pallas_call, NCL in/out."""
    B, C_in, L = x_ncl.shape
    K1 = kernel_size if kernel_size % 2 == 1 else kernel_size + 1
    K2 = (K1 // 2) * 2 + 1
    C_out = int(params['bf'].shape[0])
    pch = C_out // cardinality
    # create_reverse_complement hard-codes 5 channels (A,C,G,T,N); the torch module itself
    # only runs when in_channels == path_channels == 5.
    assert C_in == 5 and pch == 5
    assert K1 % 2 == 1 and K2 % 2 == 1

    folded = _fold_params(params, K1, K2, C_in, C_out, cardinality)
    x = x_ncl.astype(jnp.float32)        # NCL as-is: L stays on lanes, no boundary transpose

    kernel = functools.partial(_dense_residual_block_kernel, B, L, K1, K2, C_in, C_out)
    names = ['w1', 'b1', 'g1', 'bt1',
             'w2', 'b2', 'g2', 'bt2',
             'wa', 'ba', 'wfx', 'wfp', 'bf', 'gf', 'btf']
    args = [x] + [folded[n] for n in names]

    return pl.pallas_call(
        kernel,
        out_shape=jax.ShapeDtypeStruct((B, C_out, L), jnp.float32),
        in_specs=[pl.BlockSpec(memory_space=pltpu.MemorySpace.VMEM)] * len(args),
        out_specs=pl.BlockSpec(memory_space=pltpu.MemorySpace.VMEM),
        compiler_params=pltpu.CompilerParams(vmem_limit_bytes=_vmem_limit_bytes()),
    )(*args)


# -----------------------------------------------------------------------------
# Deterministic parameter init (shapes follow the torch module's __init__).
# -----------------------------------------------------------------------------
def init_params(key, C_in=5, C_out=20, kernel_size=5, cardinality=4):
    K1 = kernel_size if kernel_size % 2 == 1 else kernel_size + 1
    K2 = (K1 // 2) * 2 + 1
    pch = C_out // cardinality
    keys = iter(jax.random.split(key, 64))

    def nrm(shape, scale=0.3):
        return scale * jax.random.normal(next(keys), shape, dtype=jnp.float32)

    paths = []
    for _ in range(cardinality):
        paths.append(dict(
            w1=nrm((pch, C_in, K1)), b1=nrm((pch,), 0.1), sw1=nrm((2,), 0.5) + 0.5,
            g1=1.0 + nrm((pch,), 0.1), bt1=nrm((pch,), 0.1),
            w2=nrm((pch, pch, K2)), b2=nrm((pch,), 0.1), sw2=nrm((2,), 0.5) + 0.5,
            g2=1.0 + nrm((pch,), 0.1), bt2=nrm((pch,), 0.1),
        ))
    return dict(
        paths=paths,
        wa=nrm((C_out, C_out, 1)), ba=nrm((C_out,), 0.1),
        wf=nrm((C_out, C_in + C_out, 1)), bf=nrm((C_out,), 0.1),
        gf=1.0 + nrm((C_out,), 0.1), btf=nrm((C_out,), 0.1),
    )


# -----------------------------------------------------------------------------
# Pure-JAX reference mirroring the PyTorch code (flips / revcomp / conv), NCL layout.
# -----------------------------------------------------------------------------
def _conv1d_same_ref(x, w, b):
    p = w.shape[-1] // 2
    y = lax.conv_general_dilated(x, w, window_strides=(1,), padding=[(p, p)],
                                 dimension_numbers=('NCH', 'OIH', 'NCH'),
                                 precision=lax.Precision.HIGHEST)
    return y + b[None, :, None]


def _revcomp_ref(x):
    return jnp.flip(x, axis=2)[:, jnp.asarray(RC_PERM), :]


def _strand_sym_conv_ref(x, w, b, sw):
    xf = _conv1d_same_ref(x, w, b)
    xr = jnp.flip(_conv1d_same_ref(_revcomp_ref(x), w, b), axis=2)
    nw = jax.nn.softmax(sw)
    return nw[0] * xf + nw[1] * xr


def _bn_train_ref(x, g, bt):
    mean = jnp.mean(x, axis=(0, 2), keepdims=True)
    var = jnp.mean(jnp.square(x - mean), axis=(0, 2), keepdims=True)
    return g[None, :, None] * (x - mean) / jnp.sqrt(var + BN_EPS) + bt[None, :, None]


def dense_residual_block_ref(x, params):
    outs = []
    for pp in params['paths']:
        h = _strand_sym_conv_ref(x, pp['w1'], pp['b1'], pp['sw1'])
        h = jnp.maximum(_bn_train_ref(h, pp['g1'], pp['bt1']), 0.0)
        h = _strand_sym_conv_ref(h, pp['w2'], pp['b2'], pp['sw2'])
        h = _bn_train_ref(h, pp['g2'], pp['bt2'])
        outs.append(h)
    path_cat = jnp.concatenate(outs, axis=1)
    attn = jax.nn.sigmoid(_conv1d_same_ref(path_cat, params['wa'], params['ba']))
    path_cat = path_cat * attn
    dense = jnp.concatenate([x, path_cat], axis=1)
    out = _conv1d_same_ref(dense, params['wf'], params['bf'])
    out = _bn_train_ref(out, params['gf'], params['btf'])
    return jnp.maximum(out, 0.0)


if __name__ == "__main__":
    B, C_in, L = 2, 5, 16
    C_out, kernel_size, cardinality = 20, 5, 4

    key = jax.random.PRNGKey(0)
    kx, kp = jax.random.split(key)
    # One-hot DNA input (A,C,G,T,N), NCL like torch Conv1d input.
    bases = jax.random.randint(kx, (B, L), 0, 5)
    x = jnp.transpose(jax.nn.one_hot(bases, C_in, dtype=jnp.float32), (0, 2, 1))
    params = init_params(kp, C_in, C_out, kernel_size, cardinality)

    out = dense_residual_block_pallas(x, params, kernel_size, cardinality)
    out = jax.block_until_ready(out)
    assert out.shape == (B, C_out, L)

    ref = jax.block_until_ready(dense_residual_block_ref(x, params))
    if not np.allclose(np.asarray(out), np.asarray(ref), rtol=5e-2, atol=5e-2):
        max_err = float(np.max(np.abs(np.asarray(out) - np.asarray(ref))))
        raise AssertionError(f"kernel mismatch vs reference, max abs err = {max_err}")

    print("KERNEL_OK")
</pallas_src>

<mosaic_0001>
module attributes {stable_mosaic.version = 11 : i64} {
  func.func @_dense_residual_block_kernel(%arg0: memref<2x5x16xf32, #tpu.memory_space<vmem>>, %arg1: memref<5x20x5xbf16, #tpu.memory_space<vmem>>, %arg2: memref<20x1xf32, #tpu.memory_space<vmem>>, %arg3: memref<20x1xf32, #tpu.memory_space<vmem>>, %arg4: memref<20x1xf32, #tpu.memory_space<vmem>>, %arg5: memref<5x20x20xbf16, #tpu.memory_space<vmem>>, %arg6: memref<20x1xf32, #tpu.memory_space<vmem>>, %arg7: memref<20x1xf32, #tpu.memory_space<vmem>>, %arg8: memref<20x1xf32, #tpu.memory_space<vmem>>, %arg9: memref<20x20xbf16, #tpu.memory_space<vmem>>, %arg10: memref<20x1xf32, #tpu.memory_space<vmem>>, %arg11: memref<20x5xbf16, #tpu.memory_space<vmem>>, %arg12: memref<20x20xbf16, #tpu.memory_space<vmem>>, %arg13: memref<20x1xf32, #tpu.memory_space<vmem>>, %arg14: memref<20x1xf32, #tpu.memory_space<vmem>>, %arg15: memref<20x1xf32, #tpu.memory_space<vmem>>, %arg16: memref<2x20x16xf32, #tpu.memory_space<vmem>>) attributes {dimension_semantics = [], scalar_prefetch = 0 : i64, scratch_operands = 0 : i64, tpu.core_type = #tpu.core_type<tc>} {
    %c0 = arith.constant 0 : index
    %c0_0 = arith.constant 0 : index
    %c0_1 = arith.constant 0 : index
    %0 = vector.load %arg0[%c0, %c0_0, %c0_1] : memref<2x5x16xf32, #tpu.memory_space<vmem>>, vector<1x5x16xf32>
    %1 = vector.shape_cast %0 : vector<1x5x16xf32> to vector<5x16xf32>
    %2 = arith.truncf %1 : vector<5x16xf32> to vector<5x16xbf16>
    %c1 = arith.constant 1 : index
    %c0_2 = arith.constant 0 : index
    %c0_3 = arith.constant 0 : index
    %3 = vector.load %arg0[%c1, %c0_2, %c0_3] : memref<2x5x16xf32, #tpu.memory_space<vmem>>, vector<1x5x16xf32>
    %4 = vector.shape_cast %3 : vector<1x5x16xf32> to vector<5x16xf32>
    %5 = arith.truncf %4 : vector<5x16xf32> to vector<5x16xbf16>
    %c0_4 = arith.constant 0 : index
    %c0_5 = arith.constant 0 : index
    %c0_6 = arith.constant 0 : index
    %6 = vector.load %arg1[%c0_4, %c0_5, %c0_6] : memref<5x20x5xbf16, #tpu.memory_space<vmem>>, vector<1x20x5xbf16>
    %7 = vector.shape_cast %6 : vector<1x20x5xbf16> to vector<20x5xbf16>
    %cst = arith.constant 0.000000e+00 : bf16
    %8 = vector.broadcast %cst : bf16 to vector<5x2xbf16>
    %9 = vector.extract_strided_slice %2 {offsets = [0, 0], sizes = [5, 14], strides = [1, 1]} : vector<5x16xbf16> to vector<5x14xbf16>
    %10 = tpu.concatenate %8, %9 in 1 : vector<5x2xbf16>, vector<5x14xbf16> -> vector<5x16xbf16>
    %cst_7 = arith.constant dense<0.000000e+00> : vector<20x16xf32>
    %11 = tpu.matmul %7, %10, %cst_7 {dimension_numbers = #tpu.dot_dimension_numbers<[1], [0], [0], [1], [0, 0, 1, 1], [], []>} : vector<20x5xbf16>, vector<5x16xbf16>, vector<20x16xf32> -> vector<20x16xf32>
    %c1_8 = arith.constant 1 : index
    %c0_9 = arith.constant 0 : index
    %c0_10 = arith.constant 0 : index
    %12 = vector.load %arg1[%c1_8, %c0_9, %c0_10] : memref<5x20x5xbf16, #tpu.memory_space<vmem>>, vector<1x20x5xbf16>
    %13 = vector.shape_cast %12 : vector<1x20x5xbf16> to vector<20x5xbf16>
    %cst_11 = arith.constant 0.000000e+00 : bf16
    %14 = vector.broadcast %cst_11 : bf16 to vector<5x1xbf16>
    %15 = vector.extract_strided_slice %2 {offsets = [0, 0], sizes = [5, 15], strides = [1, 1]} : vector<5x16xbf16> to vector<5x15xbf16>
    %16 = tpu.concatenate %14, %15 in 1 : vector<5x1xbf16>, vector<5x15xbf16> -> vector<5x16xbf16>
    %cst_12 = arith.constant dense<0.000000e+00> : vector<20x16xf32>
    %17 = tpu.matmul %13, %16, %cst_12 {dimension_numbers = #tpu.dot_dimension_numbers<[1], [0], [0], [1], [0, 0, 1, 1], [], []>} : vector<20x5xbf16>, vector<5x16xbf16>, vector<20x16xf32> -> vector<20x16xf32>
    %18 = arith.addf %11, %17 : vector<20x16xf32>
    %c2 = arith.constant 2 : index
    %c0_13 = arith.constant 0 : index
    %c0_14 = arith.constant 0 : index
    %19 = vector.load %arg1[%c2, %c0_13, %c0_14] : memref<5x20x5xbf16, #tpu.memory_space<vmem>>, vector<1x20x5xbf16>
    %20 = vector.shape_cast %19 : vector<1x20x5xbf16> to vector<20x5xbf16>
    %cst_15 = arith.constant dense<0.000000e+00> : vector<20x16xf32>
    %21 = tpu.matmul %20, %2, %cst_15 {dimension_numbers = #tpu.dot_dimension_numbers<[1], [0], [0], [1], [0, 0, 1, 1], [], []>} : vector<20x5xbf16>, vector<5x16xbf16>, vector<20x16xf32> -> vector<20x16xf32>
    %22 = arith.addf %18, %21 : vector<20x16xf32>
    %c3 = arith.constant 3 : index
    %c0_16 = arith.constant 0 : index
    %c0_17 = arith.constant 0 : index
    %23 = vector.load %arg1[%c3, %c0_16, %c0_17] : memref<5x20x5xbf16, #tpu.memory_space<vmem>>, vector<1x20x5xbf16>
    %24 = vector.shape_cast %23 : vector<1x20x5xbf16> to vector<20x5xbf16>
    %cst_18 = arith.constant 0.000000e+00 : bf16
    %25 = vector.broadcast %cst_18 : bf16 to vector<5x1xbf16>
    %26 = vector.extract_strided_slice %2 {offsets = [0, 1], sizes = [5, 15], strides = [1, 1]} : vector<5x16xbf16> to vector<5x15xbf16>
    %27 = tpu.concatenate %26, %25 in 1 : vector<5x15xbf16>, vector<5x1xbf16> -> vector<5x16xbf16>
    %cst_19 = arith.constant dense<0.000000e+00> : vector<20x16xf32>
    %28 = tpu.matmul %24, %27, %cst_19 {dimension_numbers = #tpu.dot_dimension_numbers<[1], [0], [0], [1], [0, 0, 1, 1], [], []>} : vector<20x5xbf16>, vector<5x16xbf16>, vector<20x16xf32> -> vector<20x16xf32>
    %29 = arith.addf %22, %28 : vector<20x16xf32>
    %c4 = arith.constant 4 : index
    %c0_20 = arith.constant 0 : index
    %c0_21 = arith.constant 0 : index
    %30 = vector.load %arg1[%c4, %c0_20, %c0_21] : memref<5x20x5xbf16, #tpu.memory_space<vmem>>, vector<1x20x5xbf16>
    %31 = vector.shape_cast %30 : vector<1x20x5xbf16> to vector<20x5xbf16>
    %cst_22 = arith.constant 0.000000e+00 : bf16
    %32 = vector.broadcast %cst_22 : bf16 to vector<5x2xbf16>
    %33 = vector.extract_strided_slice %2 {offsets = [0, 2], sizes = [5, 14], strides = [1, 1]} : vector<5x16xbf16> to vector<5x14xbf16>
    %34 = tpu.concatenate %33, %32 in 1 : vector<5x14xbf16>, vector<5x2xbf16> -> vector<5x16xbf16>
    %cst_23 = arith.constant dense<0.000000e+00> : vector<20x16xf32>
    %35 = tpu.matmul %31, %34, %cst_23 {dimension_numbers = #tpu.dot_dimension_numbers<[1], [0], [0], [1], [0, 0, 1, 1], [], []>} : vector<20x5xbf16>, vector<5x16xbf16>, vector<20x16xf32> -> vector<20x16xf32>
    %36 = arith.addf %29, %35 : vector<20x16xf32>
    %c0_24 = arith.constant 0 : index
    %c0_25 = arith.constant 0 : index
    %37 = vector.load %arg2[%c0_24, %c0_25] : memref<20x1xf32, #tpu.memory_space<vmem>>, vector<20x1xf32>
    %38 = vector.broadcast %37 : vector<20x1xf32> to vector<20x16xf32>
    %39 = arith.addf %36, %38 : vector<20x16xf32>
    %c0_26 = arith.constant 0 : index
    %c0_27 = arith.constant 0 : index
    %c0_28 = arith.constant 0 : index
    %40 = vector.load %arg1[%c0_26, %c0_27, %c0_28] : memref<5x20x5xbf16, #tpu.memory_space<vmem>>, vector<1x20x5xbf16>
    %41 = vector.shape_cast %40 : vector<1x20x5xbf16> to vector<20x5xbf16>
    %cst_29 = arith.constant 0.000000e+00 : bf16
    %42 = vector.broadcast %cst_29 : bf16 to vector<5x2xbf16>
    %43 = vector.extract_strided_slice %5 {offsets = [0, 0], sizes = [5, 14], strides = [1, 1]} : vector<5x16xbf16> to vector<5x14xbf16>
    %44 = tpu.concatenate %42, %43 in 1 : vector<5x2xbf16>, vector<5x14xbf16> -> vector<5x16xbf16>
    %cst_30 = arith.constant dense<0.000000e+00> : vector<20x16xf32>
    %45 = tpu.matmul %41, %44, %cst_30 {dimension_numbers = #tpu.dot_dimension_numbers<[1], [0], [0], [1], [0, 0, 1, 1], [], []>} : vector<20x5xbf16>, vector<5x16xbf16>, vector<20x16xf32> -> vector<20x16xf32>
    %c1_31 = arith.constant 1 : index
    %c0_32 = arith.constant 0 : index
    %c0_33 = arith.constant 0 : index
    %46 = vector.load %arg1[%c1_31, %c0_32, %c0_33] : memref<5x20x5xbf16, #tpu.memory_space<vmem>>, vector<1x20x5xbf16>
    %47 = vector.shape_cast %46 : vector<1x20x5xbf16> to vector<20x5xbf16>
    %cst_34 = arith.constant 0.000000e+00 : bf16
    %48 = vector.broadcast %cst_34 : bf16 to vector<5x1xbf16>
    %49 = vector.extract_strided_slice %5 {offsets = [0, 0], sizes = [5, 15], strides = [1, 1]} : vector<5x16xbf16> to vector<5x15xbf16>
    %50 = tpu.concatenate %48, %49 in 1 : vector<5x1xbf16>, vector<5x15xbf16> -> vector<5x16xbf16>
    %cst_35 = arith.constant dense<0.000000e+00> : vector<20x16xf32>
    %51 = tpu.matmul %47, %50, %cst_35 {dimension_numbers = #tpu.dot_dimension_numbers<[1], [0], [0], [1], [0, 0, 1, 1], [], []>} : vector<20x5xbf16>, vector<5x16xbf16>, vector<20x16xf32> -> vector<20x16xf32>
    %52 = arith.addf %45, %51 : vector<20x16xf32>
    %c2_36 = arith.constant 2 : index
    %c0_37 = arith.constant 0 : index
    %c0_38 = arith.constant 0 : index
    %53 = vector.load %arg1[%c2_36, %c0_37, %c0_38] : memref<5x20x5xbf16, #tpu.memory_space<vmem>>, vector<1x20x5xbf16>
    %54 = vector.shape_cast %53 : vector<1x20x5xbf16> to vector<20x5xbf16>
    %cst_39 = arith.constant dense<0.000000e+00> : vector<20x16xf32>
    %55 = tpu.matmul %54, %5, %cst_39 {dimension_numbers = #tpu.dot_dimension_numbers<[1], [0], [0], [1], [0, 0, 1, 1], [], []>} : vector<20x5xbf16>, vector<5x16xbf16>, vector<20x16xf32> -> vector<20x16xf32>
    %56 = arith.addf %52, %55 : vector<20x16xf32>
    %c3_40 = arith.constant 3 : index
    %c0_41 = arith.constant 0 : index
    %c0_42 = arith.constant 0 : index
    %57 = vector.load %arg1[%c3_40, %c0_41, %c0_42] : memref<5x20x5xbf16, #tpu.memory_space<vmem>>, vector<1x20x5xbf16>
    %58 = vector.shape_cast %57 : vector<1x20x5xbf16> to vector<20x5xbf16>
    %cst_43 = arith.constant 0.000000e+00 : bf16
    %59 = vector.broadcast %cst_43 : bf16 to vector<5x1xbf16>
    %60 = vector.extract_strided_slice %5 {offsets = [0, 1], sizes = [5, 15], strides = [1, 1]} : vector<5x16xbf16> to vector<5x15xbf16>
    %61 = tpu.concatenate %60, %59 in 1 : vector<5x15xbf16>, vector<5x1xbf16> -> vector<5x16xbf16>
    %cst_44 = arith.constant dense<0.000000e+00> : vector<20x16xf32>
    %62 = tpu.matmul %58, %61, %cst_44 {dimension_numbers = #tpu.dot_dimension_numbers<[1], [0], [0], [1], [0, 0, 1, 1], [], []>} : vector<20x5xbf16>, vector<5x16xbf16>, vector<20x16xf32> -> vector<20x16xf32>
    %63 = arith.addf %56, %62 : vector<20x16xf32>
    %c4_45 = arith.constant 4 : index
    %c0_46 = arith.constant 0 : index
    %c0_47 = arith.constant 0 : index
    %64 = vector.load %arg1[%c4_45, %c0_46, %c0_47] : memref<5x20x5xbf16, #tpu.memory_space<vmem>>, vector<1x20x5xbf16>
    %65 = vector.shape_cast %64 : vector<1x20x5xbf16> to vector<20x5xbf16>
    %cst_48 = arith.constant 0.000000e+00 : bf16
    %66 = vector.broadcast %cst_48 : bf16 to vector<5x2xbf16>
    %67 = vector.extract_strided_slice %5 {offsets = [0, 2], sizes = [5, 14], strides = [1, 1]} : vector<5x16xbf16> to vector<5x14xbf16>
    %68 = tpu.concatenate %67, %66 in 1 : vector<5x14xbf16>, vector<5x2xbf16> -> vector<5x16xbf16>
    %cst_49 = arith.constant dense<0.000000e+00> : vector<20x16xf32>
    %69 = tpu.matmul %65, %68, %cst_49 {dimension_numbers = #tpu.dot_dimension_numbers<[1], [0], [0], [1], [0, 0, 1, 1], [], []>} : vector<20x5xbf16>, vector<5x16xbf16>, vector<20x16xf32> -> vector<20x16xf32>
    %70 = arith.addf %63, %69 : vector<20x16xf32>
    %c0_50 = arith.constant 0 : index
    %c0_51 = arith.constant 0 : index
    %71 = vector.load %arg2[%c0_50, %c0_51] : memref<20x1xf32, #tpu.memory_space<vmem>>, vector<20x1xf32>
    %72 = vector.broadcast %71 : vector<20x1xf32> to vector<20x16xf32>
    %73 = arith.addf %70, %72 : vector<20x16xf32>
    %cst_52 = arith.constant dense<0.000000e+00> : vector<20xf32>
    %74 = vector.multi_reduction <add>, %39, %cst_52 [1] : vector<20x16xf32> to vector<20xf32>
    %75 = vector.shape_cast %74 : vector<20xf32> to vector<20x1xf32>
    %76 = arith.mulf %39, %39 : vector<20x16xf32>
    %cst_53 = arith.constant dense<0.000000e+00> : vector<20xf32>
    %77 = vector.multi_reduction <add>, %76, %cst_53 [1] : vector<20x16xf32> to vector<20xf32>
    %78 = vector.shape_cast %77 : vector<20xf32> to vector<20x1xf32>
    %cst_54 = arith.constant dense<0.000000e+00> : vector<20xf32>
    %79 = vector.multi_reduction <add>, %73, %cst_54 [1] : vector<20x16xf32> to vector<20xf32>
    %80 = vector.shape_cast %79 : vector<20xf32> to vector<20x1xf32>
    %81 = arith.mulf %73, %73 : vector<20x16xf32>
    %cst_55 = arith.constant dense<0.000000e+00> : vector<20xf32>
    %82 = vector.multi_reduction <add>, %81, %cst_55 [1] : vector<20x16xf32> to vector<20xf32>
    %83 = vector.shape_cast %82 : vector<20xf32> to vector<20x1xf32>
    %84 = arith.addf %75, %80 : vector<20x1xf32>
    %85 = arith.addf %78, %83 : vector<20x1xf32>
    %cst_56 = arith.constant 3.125000e-02 : f32
    %86 = vector.broadcast %cst_56 : f32 to vector<20x1xf32>
    %87 = arith.mulf %84, %86 : vector<20x1xf32>
    %cst_57 = arith.constant 3.125000e-02 : f32
    %88 = vector.broadcast %cst_57 : f32 to vector<20x1xf32>
    %89 = arith.mulf %85, %88 : vector<20x1xf32>
    %90 = arith.mulf %87, %87 : vector<20x1xf32>
    %91 = arith.subf %89, %90 : vector<20x1xf32>
    %cst_58 = arith.constant 0.000000e+00 : f32
    %92 = vector.broadcast %cst_58 : f32 to vector<20x1xf32>
    %93 = arith.maximumf %91, %92 : vector<20x1xf32>
    %c0_59 = arith.constant 0 : index
    %c0_60 = arith.constant 0 : index
    %94 = vector.load %arg3[%c0_59, %c0_60] : memref<20x1xf32, #tpu.memory_space<vmem>>, vector<20x1xf32>
    %cst_61 = arith.constant 9.99999974E-6 : f32
    %95 = vector.broadcast %cst_61 : f32 to vector<20x1xf32>
    %96 = arith.addf %93, %95 : vector<20x1xf32>
    %97 = math.rsqrt %96 : vector<20x1xf32>
    %98 = arith.mulf %94, %97 : vector<20x1xf32>
    %99 = vector.broadcast %98 : vector<20x1xf32> to vector<20x16xf32>
    %100 = arith.mulf %39, %99 : vector<20x16xf32>
    %c0_62 = arith.constant 0 : index
    %c0_63 = arith.constant 0 : index
    %101 = vector.load %arg4[%c0_62, %c0_63] : memref<20x1xf32, #tpu.memory_space<vmem>>, vector<20x1xf32>
    %102 = arith.mulf %87, %98 : vector<20x1xf32>
    %103 = arith.subf %101, %102 : vector<20x1xf32>
    %104 = vector.broadcast %103 : vector<20x1xf32> to vector<20x16xf32>
    %105 = arith.addf %100, %104 : vector<20x16xf32>
    %cst_64 = arith.constant 0.000000e+00 : f32
    %106 = vector.broadcast %cst_64 : f32 to vector<20x16xf32>
    %107 = arith.maximumf %105, %106 : vector<20x16xf32>
    %c0_65 = arith.constant 0 : index
    %c0_66 = arith.constant 0 : index
    %108 = vector.load %arg3[%c0_65, %c0_66] : memref<20x1xf32, #tpu.memory_space<vmem>>, vector<20x1xf32>
    %cst_67 = arith.constant 9.99999974E-6 : f32
    %109 = vector.broadcast %cst_67 : f32 to vector<20x1xf32>
    %110 = arith.addf %93, %109 : vector<20x1xf32>
    %111 = math.rsqrt %110 : vector<20x1xf32>
    %112 = arith.mulf %108, %111 : vector<20x1xf32>
    %113 = vector.broadcast %112 : vector<20x1xf32> to vector<20x16xf32>
    %114 = arith.mulf %73, %113 : vector<20x16xf32>
    %c0_68 = arith.constant 0 : index
    %c0_69 = arith.constant 0 : index
    %115 = vector.load %arg4[%c0_68, %c0_69] : memref<20x1xf32, #tpu.memory_space<vmem>>, vector<20x1xf32>
    %116 = arith.mulf %87, %112 : vector<20x1xf32>
    %117 = arith.subf %115, %116 : vector<20x1xf32>
    %118 = vector.broadcast %117 : vector<20x1xf32> to vector<20x16xf32>
    %119 = arith.addf %114, %118 : vector<20x16xf32>
    %cst_70 = arith.constant 0.000000e+00 : f32
    %120 = vector.broadcast %cst_70 : f32 to vector<20x16xf32>
    %121 = arith.maximumf %119, %120 : vector<20x16xf32>
    %122 = arith.truncf %107 : vector<20x16xf32> to vector<20x16xbf16>
    %c0_71 = arith.constant 0 : index
    %c0_72 = arith.constant 0 : index
    %c0_73 = arith.constant 0 : index
    %123 = vector.load %arg5[%c0_71, %c0_72, %c0_73] : memref<5x20x20xbf16, #tpu.memory_space<vmem>>, vector<1x20x20xbf16>
    %124 = vector.shape_cast %123 : vector<1x20x20xbf16> to vector<20x20xbf16>
    %cst_74 = arith.constant 0.000000e+00 : bf16
    %125 = vector.broadcast %cst_74 : bf16 to vector<20x2xbf16>
    %126 = vector.extract_strided_slice %122 {offsets = [0, 0], sizes = [20, 14], strides = [1, 1]} : vector<20x16xbf16> to vector<20x14xbf16>
    %127 = tpu.concatenate %125, %126 in 1 : vector<20x2xbf16>, vector<20x14xbf16> -> vector<20x16xbf16>
    %cst_75 = arith.constant dense<0.000000e+00> : vector<20x16xf32>
    %128 = tpu.matmul %124, %127, %cst_75 {dimension_numbers = #tpu.dot_dimension_numbers<[1], [0], [0], [1], [0, 0, 1, 1], [], []>} : vector<20x20xbf16>, vector<20x16xbf16>, vector<20x16xf32> -> vector<20x16xf32>
    %c1_76 = arith.constant 1 : index
    %c0_77 = arith.constant 0 : index
    %c0_78 = arith.constant 0 : index
    %129 = vector.load %arg5[%c1_76, %c0_77, %c0_78] : memref<5x20x20xbf16, #tpu.memory_space<vmem>>, vector<1x20x20xbf16>
    %130 = vector.shape_cast %129 : vector<1x20x20xbf16> to vector<20x20xbf16>
    %cst_79 = arith.constant 0.000000e+00 : bf16
    %131 = vector.broadcast %cst_79 : bf16 to vector<20x1xbf16>
    %132 = vector.extract_strided_slice %122 {offsets = [0, 0], sizes = [20, 15], strides = [1, 1]} : vector<20x16xbf16> to vector<20x15xbf16>
    %133 = tpu.concatenate %131, %132 in 1 : vector<20x1xbf16>, vector<20x15xbf16> -> vector<20x16xbf16>
    %cst_80 = arith.constant dense<0.000000e+00> : vector<20x16xf32>
    %134 = tpu.matmul %130, %133, %cst_80 {dimension_numbers = #tpu.dot_dimension_numbers<[1], [0], [0], [1], [0, 0, 1, 1], [], []>} : vector<20x20xbf16>, vector<20x16xbf16>, vector<20x16xf32> -> vector<20x16xf32>
    %135 = arith.addf %128, %134 : vector<20x16xf32>
    %c2_81 = arith.constant 2 : index
    %c0_82 = arith.constant 0 : index
    %c0_83 = arith.constant 0 : index
    %136 = vector.load %arg5[%c2_81, %c0_82, %c0_83] : memref<5x20x20xbf16, #tpu.memory_space<vmem>>, vector<1x20x20xbf16>
    %137 = vector.shape_cast %136 : vector<1x20x20xbf16> to vector<20x20xbf16>
    %cst_84 = arith.constant dense<0.000000e+00> : vector<20x16xf32>
    %138 = tpu.matmul %137, %122, %cst_84 {dimension_numbers = #tpu.dot_dimension_numbers<[1], [0], [0], [1], [0, 0, 1, 1], [], []>} : vector<20x20xbf16>, vector<20x16xbf16>, vector<20x16xf32> -> vector<20x16xf32>
    %139 = arith.addf %135, %138 : vector<20x16xf32>
    %c3_85 = arith.constant 3 : index
    %c0_86 = arith.constant 0 : index
    %c0_87 = arith.constant 0 : index
    %140 = vector.load %arg5[%c3_85, %c0_86, %c0_87] : memref<5x20x20xbf16, #tpu.memory_space<vmem>>, vector<1x20x20xbf16>
    %141 = vector.shape_cast %140 : vector<1x20x20xbf16> to vector<20x20xbf16>
    %cst_88 = arith.constant 0.000000e+00 : bf16
    %142 = vector.broadcast %cst_88 : bf16 to vector<20x1xbf16>
    %143 = vector.extract_strided_slice %122 {offsets = [0, 1], sizes = [20, 15], strides = [1, 1]} : vector<20x16xbf16> to vector<20x15xbf16>
    %144 = tpu.concatenate %143, %142 in 1 : vector<20x15xbf16>, vector<20x1xbf16> -> vector<20x16xbf16>
    %cst_89 = arith.constant dense<0.000000e+00> : vector<20x16xf32>
    %145 = tpu.matmul %141, %144, %cst_89 {dimension_numbers = #tpu.dot_dimension_numbers<[1], [0], [0], [1], [0, 0, 1, 1], [], []>} : vector<20x20xbf16>, vector<20x16xbf16>, vector<20x16xf32> -> vector<20x16xf32>
    %146 = arith.addf %139, %145 : vector<20x16xf32>
    %c4_90 = arith.constant 4 : index
    %c0_91 = arith.constant 0 : index
    %c0_92 = arith.constant 0 : index
    %147 = vector.load %arg5[%c4_90, %c0_91, %c0_92] : memref<5x20x20xbf16, #tpu.memory_space<vmem>>, vector<1x20x20xbf16>
    %148 = vector.shape_cast %147 : vector<1x20x20xbf16> to vector<20x20xbf16>
    %cst_93 = arith.constant 0.000000e+00 : bf16
    %149 = vector.broadcast %cst_93 : bf16 to vector<20x2xbf16>
    %150 = vector.extract_strided_slice %122 {offsets = [0, 2], sizes = [20, 14], strides = [1, 1]} : vector<20x16xbf16> to vector<20x14xbf16>
    %151 = tpu.concatenate %150, %149 in 1 : vector<20x14xbf16>, vector<20x2xbf16> -> vector<20x16xbf16>
    %cst_94 = arith.constant dense<0.000000e+00> : vector<20x16xf32>
    %152 = tpu.matmul %148, %151, %cst_94 {dimension_numbers = #tpu.dot_dimension_numbers<[1], [0], [0], [1], [0, 0, 1, 1], [], []>} : vector<20x20xbf16>, vector<20x16xbf16>, vector<20x16xf32> -> vector<20x16xf32>
    %153 = arith.addf %146, %152 : vector<20x16xf32>
    %c0_95 = arith.constant 0 : index
    %c0_96 = arith.constant 0 : index
    %154 = vector.load %arg6[%c0_95, %c0_96] : memref<20x1xf32, #tpu.memory_space<vmem>>, vector<20x1xf32>
    %155 = vector.broadcast %154 : vector<20x1xf32> to vector<20x16xf32>
    %156 = arith.addf %153, %155 : vector<20x16xf32>
    %157 = arith.truncf %121 : vector<20x16xf32> to vector<20x16xbf16>
    %c0_97 = arith.constant 0 : index
    %c0_98 = arith.constant 0 : index
    %c0_99 = arith.constant 0 : index
    %158 = vector.load %arg5[%c0_97, %c0_98, %c0_99] : memref<5x20x20xbf16, #tpu.memory_space<vmem>>, vector<1x20x20xbf16>
    %159 = vector.shape_cast %158 : vector<1x20x20xbf16> to vector<20x20xbf16>
    %cst_100 = arith.constant 0.000000e+00 : bf16
    %160 = vector.broadcast %cst_100 : bf16 to vector<20x2xbf16>
    %161 = vector.extract_strided_slice %157 {offsets = [0, 0], sizes = [20, 14], strides = [1, 1]} : vector<20x16xbf16> to vector<20x14xbf16>
    %162 = tpu.concatenate %160, %161 in 1 : vector<20x2xbf16>, vector<20x14xbf16> -> vector<20x16xbf16>
    %cst_101 = arith.constant dense<0.000000e+00> : vector<20x16xf32>
    %163 = tpu.matmul %159, %162, %cst_101 {dimension_numbers = #tpu.dot_dimension_numbers<[1], [0], [0], [1], [0, 0, 1, 1], [], []>} : vector<20x20xbf16>, vector<20x16xbf16>, vector<20x16xf32> -> vector<20x16xf32>
    %c1_102 = arith.constant 1 : index
    %c0_103 = arith.constant 0 : index
    %c0_104 = arith.constant 0 : index
    %164 = vector.load %arg5[%c1_102, %c0_103, %c0_104] : memref<5x20x20xbf16, #tpu.memory_space<vmem>>, vector<1x20x20xbf16>
    %165 = vector.shape_cast %164 : vector<1x20x20xbf16> to vector<20x20xbf16>
    %cst_105 = arith.constant 0.000000e+00 : bf16
    %166 = vector.broadcast %cst_105 : bf16 to vector<20x1xbf16>
    %167 = vector.extract_strided_slice %157 {offsets = [0, 0], sizes = [20, 15], strides = [1, 1]} : vector<20x16xbf16> to vector<20x15xbf16>
    %168 = tpu.concatenate %166, %167 in 1 : vector<20x1xbf16>, vector<20x15xbf16> -> vector<20x16xbf16>
    %cst_106 = arith.constant dense<0.000000e+00> : vector<20x16xf32>
    %169 = tpu.matmul %165, %168, %cst_106 {dimension_numbers = #tpu.dot_dimension_numbers<[1], [0], [0], [1], [0, 0, 1, 1], [], []>} : vector<20x20xbf16>, vector<20x16xbf16>, vector<20x16xf32> -> vector<20x16xf32>
    %170 = arith.addf %163, %169 : vector<20x16xf32>
    %c2_107 = arith.constant 2 : index
    %c0_108 = arith.constant 0 : index
    %c0_109 = arith.constant 0 : index
    %171 = vector.load %arg5[%c2_107, %c0_108, %c0_109] : memref<5x20x20xbf16, #tpu.memory_space<vmem>>, vector<1x20x20xbf16>
    %172 = vector.shape_cast %171 : vector<1x20x20xbf16> to vector<20x20xbf16>
    %cst_110 = arith.constant dense<0.000000e+00> : vector<20x16xf32>
    %173 = tpu.matmul %172, %157, %cst_110 {dimension_numbers = #tpu.dot_dimension_numbers<[1], [0], [0], [1], [0, 0, 1, 1], [], []>} : vector<20x20xbf16>, vector<20x16xbf16>, vector<20x16xf32> -> vector<20x16xf32>
    %174 = arith.addf %170, %173 : vector<20x16xf32>
    %c3_111 = arith.constant 3 : index
    %c0_112 = arith.constant 0 : index
    %c0_113 = arith.constant 0 : index
    %175 = vector.load %arg5[%c3_111, %c0_112, %c0_113] : memref<5x20x20xbf16, #tpu.memory_space<vmem>>, vector<1x20x20xbf16>
    %176 = vector.shape_cast %175 : vector<1x20x20xbf16> to vector<20x20xbf16>
    %cst_114 = arith.constant 0.000000e+00 : bf16
    %177 = vector.broadcast %cst_114 : bf16 to vector<20x1xbf16>
    %178 = vector.extract_strided_slice %157 {offsets = [0, 1], sizes = [20, 15], strides = [1, 1]} : vector<20x16xbf16> to vector<20x15xbf16>
    %179 = tpu.concatenate %178, %177 in 1 : vector<20x15xbf16>, vector<20x1xbf16> -> vector<20x16xbf16>
    %cst_115 = arith.constant dense<0.000000e+00> : vector<20x16xf32>
    %180 = tpu.matmul %176, %179, %cst_115 {dimension_numbers = #tpu.dot_dimension_numbers<[1], [0], [0], [1], [0, 0, 1, 1], [], []>} : vector<20x20xbf16>, vector<20x16xbf16>, vector<20x16xf32> -> vector<20x16xf32>
    %181 = arith.addf %174, %180 : vector<20x16xf32>
    %c4_116 = arith.constant 4 : index
    %c0_117 = arith.constant 0 : index
    %c0_118 = arith.constant 0 : index
    %182 = vector.load %arg5[%c4_116, %c0_117, %c0_118] : memref<5x20x20xbf16, #tpu.memory_space<vmem>>, vector<1x20x20xbf16>
    %183 = vector.shape_cast %182 : vector<1x20x20xbf16> to vector<20x20xbf16>
    %cst_119 = arith.constant 0.000000e+00 : bf16
    %184 = vector.broadcast %cst_119 : bf16 to vector<20x2xbf16>
    %185 = vector.extract_strided_slice %157 {offsets = [0, 2], sizes = [20, 14], strides = [1, 1]} : vector<20x16xbf16> to vector<20x14xbf16>
    %186 = tpu.concatenate %185, %184 in 1 : vector<20x14xbf16>, vector<20x2xbf16> -> vector<20x16xbf16>
    %cst_120 = arith.constant dense<0.000000e+00> : vector<20x16xf32>
    %187 = tpu.matmul %183, %186, %cst_120 {dimension_numbers = #tpu.dot_dimension_numbers<[1], [0], [0], [1], [0, 0, 1, 1], [], []>} : vector<20x20xbf16>, vector<20x16xbf16>, vector<20x16xf32> -> vector<20x16xf32>
    %188 = arith.addf %181, %187 : vector<20x16xf32>
    %c0_121 = arith.constant 0 : index
    %c0_122 = arith.constant 0 : index
    %189 = vector.load %arg6[%c0_121, %c0_122] : memref<20x1xf32, #tpu.memory_space<vmem>>, vector<20x1xf32>
    %190 = vector.broadcast %189 : vector<20x1xf32> to vector<20x16xf32>
    %191 = arith.addf %188, %190 : vector<20x16xf32>
    %cst_123 = arith.constant dense<0.000000e+00> : vector<20xf32>
    %192 = vector.multi_reduction <add>, %156, %cst_123 [1] : vector<20x16xf32> to vector<20xf32>
    %193 = vector.shape_cast %192 : vector<20xf32> to vector<20x1xf32>
    %194 = arith.mulf %156, %156 : vector<20x16xf32>
    %cst_124 = arith.constant dense<0.000000e+00> : vector<20xf32>
    %195 = vector.multi_reduction <add>, %194, %cst_124 [1] : vector<20x16xf32> to vector<20xf32>
    %196 = vector.shape_cast %195 : vector<20xf32> to vector<20x1xf32>
    %cst_125 = arith.constant dense<0.000000e+00> : vector<20xf32>
    %197 = vector.multi_reduction <add>, %191, %cst_125 [1] : vector<20x16xf32> to vector<20xf32>
    %198 = vector.shape_cast %197 : vector<20xf32> to vector<20x1xf32>
    %199 = arith.mulf %191, %191 : vector<20x16xf32>
    %cst_126 = arith.constant dense<0.000000e+00> : vector<20xf32>
    %200 = vector.multi_reduction <add>, %199, %cst_126 [1] : vector<20x16xf32> to vector<20xf32>
    %201 = vector.shape_cast %200 : vector<20xf32> to vector<20x1xf32>
    %202 = arith.addf %193, %198 : vector<20x1xf32>
    %203 = arith.addf %196, %201 : vector<20x1xf32>
    %cst_127 = arith.constant 3.125000e-02 : f32
    %204 = vector.broadcast %cst_127 : f32 to vector<20x1xf32>
    %205 = arith.mulf %202, %204 : vector<20x1xf32>
    %cst_128 = arith.constant 3.125000e-02 : f32
    %206 = vector.broadcast %cst_128 : f32 to vector<20x1xf32>
    %207 = arith.mulf %203, %206 : vector<20x1xf32>
    %208 = arith.mulf %205, %205 : vector<20x1xf32>
    %209 = arith.subf %207, %208 : vector<20x1xf32>
    %cst_129 = arith.constant 0.000000e+00 : f32
    %210 = vector.broadcast %cst_129 : f32 to vector<20x1xf32>
    %211 = arith.maximumf %209, %210 : vector<20x1xf32>
    %c0_130 = arith.constant 0 : index
    %c0_131 = arith.constant 0 : index
    %212 = vector.load %arg7[%c0_130, %c0_131] : memref<20x1xf32, #tpu.memory_space<vmem>>, vector<20x1xf32>
    %cst_132 = arith.constant 9.99999974E-6 : f32
    %213 = vector.broadcast %cst_132 : f32 to vector<20x1xf32>
    %214 = arith.addf %211, %213 : vector<20x1xf32>
    %215 = math.rsqrt %214 : vector<20x1xf32>
    %216 = arith.mulf %212, %215 : vector<20x1xf32>
    %217 = vector.broadcast %216 : vector<20x1xf32> to vector<20x16xf32>
    %218 = arith.mulf %156, %217 : vector<20x16xf32>
    %c0_133 = arith.constant 0 : index
    %c0_134 = arith.constant 0 : index
    %219 = vector.load %arg8[%c0_133, %c0_134] : memref<20x1xf32, #tpu.memory_space<vmem>>, vector<20x1xf32>
    %220 = arith.mulf %205, %216 : vector<20x1xf32>
    %221 = arith.subf %219, %220 : vector<20x1xf32>
    %222 = vector.broadcast %221 : vector<20x1xf32> to vector<20x16xf32>
    %223 = arith.addf %218, %222 : vector<20x16xf32>
    %c0_135 = arith.constant 0 : index
    %c0_136 = arith.constant 0 : index
    %224 = vector.load %arg7[%c0_135, %c0_136] : memref<20x1xf32, #tpu.memory_space<vmem>>, vector<20x1xf32>
    %cst_137 = arith.constant 9.99999974E-6 : f32
    %225 = vector.broadcast %cst_137 : f32 to vector<20x1xf32>
    %226 = arith.addf %211, %225 : vector<20x1xf32>
    %227 = math.rsqrt %226 : vector<20x1xf32>
    %228 = arith.mulf %224, %227 : vector<20x1xf32>
    %229 = vector.broadcast %228 : vector<20x1xf32> to vector<20x16xf32>
    %230 = arith.mulf %191, %229 : vector<20x16xf32>
    %c0_138 = arith.constant 0 : index
    %c0_139 = arith.constant 0 : index
    %231 = vector.load %arg8[%c0_138, %c0_139] : memref<20x1xf32, #tpu.memory_space<vmem>>, vector<20x1xf32>
    %232 = arith.mulf %205, %228 : vector<20x1xf32>
    %233 = arith.subf %231, %232 : vector<20x1xf32>
    %234 = vector.broadcast %233 : vector<20x1xf32> to vector<20x16xf32>
    %235 = arith.addf %230, %234 : vector<20x16xf32>
    %c0_140 = arith.constant 0 : index
    %c0_141 = arith.constant 0 : index
    %236 = vector.load %arg9[%c0_140, %c0_141] : memref<20x20xbf16, #tpu.memory_space<vmem>>, vector<20x20xbf16>
    %237 = arith.truncf %223 : vector<20x16xf32> to vector<20x16xbf16>
    %cst_142 = arith.constant dense<0.000000e+00> : vector<20x16xf32>
    %238 = tpu.matmul %236, %237, %cst_142 {dimension_numbers = #tpu.dot_dimension_numbers<[1], [0], [0], [1], [0, 0, 1, 1], [], []>} : vector<20x20xbf16>, vector<20x16xbf16>, vector<20x16xf32> -> vector<20x16xf32>
    %c0_143 = arith.constant 0 : index
    %c0_144 = arith.constant 0 : index
    %239 = vector.load %arg10[%c0_143, %c0_144] : memref<20x1xf32, #tpu.memory_space<vmem>>, vector<20x1xf32>
    %240 = vector.broadcast %239 : vector<20x1xf32> to vector<20x16xf32>
    %241 = arith.addf %238, %240 : vector<20x16xf32>
    %cst_145 = arith.constant 0.000000e+00 : f32
    %242 = vector.broadcast %cst_145 : f32 to vector<20x16xf32>
    %243 = arith.subf %242, %241 : vector<20x16xf32>
    %244 = math.exp %243 : vector<20x16xf32>
    %cst_146 = arith.constant 1.000000e+00 : f32
    %245 = vector.broadcast %cst_146 : f32 to vector<20x16xf32>
    %246 = arith.addf %245, %244 : vector<20x16xf32>
    %247 = tpu.reciprocal %246 {approx = true} : vector<20x16xf32> -> vector<20x16xf32>
    %248 = arith.mulf %223, %247 : vector<20x16xf32>
    %249 = arith.truncf %235 : vector<20x16xf32> to vector<20x16xbf16>
    %cst_147 = arith.constant dense<0.000000e+00> : vector<20x16xf32>
    %250 = tpu.matmul %236, %249, %cst_147 {dimension_numbers = #tpu.dot_dimension_numbers<[1], [0], [0], [1], [0, 0, 1, 1], [], []>} : vector<20x20xbf16>, vector<20x16xbf16>, vector<20x16xf32> -> vector<20x16xf32>
    %c0_148 = arith.constant 0 : index
    %c0_149 = arith.constant 0 : index
    %251 = vector.load %arg10[%c0_148, %c0_149] : memref<20x1xf32, #tpu.memory_space<vmem>>, vector<20x1xf32>
    %252 = vector.broadcast %251 : vector<20x1xf32> to vector<20x16xf32>
    %253 = arith.addf %250, %252 : vector<20x16xf32>
    %cst_150 = arith.constant 0.000000e+00 : f32
    %254 = vector.broadcast %cst_150 : f32 to vector<20x16xf32>
    %255 = arith.subf %254, %253 : vector<20x16xf32>
    %256 = math.exp %255 : vector<20x16xf32>
    %cst_151 = arith.constant 1.000000e+00 : f32
    %257 = vector.broadcast %cst_151 : f32 to vector<20x16xf32>
    %258 = arith.addf %257, %256 : vector<20x16xf32>
    %259 = tpu.reciprocal %258 {approx = true} : vector<20x16xf32> -> vector<20x16xf32>
    %260 = arith.mulf %235, %259 : vector<20x16xf32>
    %c0_152 = arith.constant 0 : index
    %c0_153 = arith.constant 0 : index
    %261 = vector.load %arg11[%c0_152, %c0_153] : memref<20x5xbf16, #tpu.memory_space<vmem>>, vector<20x5xbf16>
    %c0_154 = arith.constant 0 : index
    %c0_155 = arith.constant 0 : index
    %262 = vector.load %arg12[%c0_154, %c0_155] : memref<20x20xbf16, #tpu.memory_space<vmem>>, vector<20x20xbf16>
    %cst_156 = arith.constant dense<0.000000e+00> : vector<20x16xf32>
    %263 = tpu.matmul %261, %2, %cst_156 {dimension_numbers = #tpu.dot_dimension_numbers<[1], [0], [0], [1], [0, 0, 1, 1], [], []>} : vector<20x5xbf16>, vector<5x16xbf16>, vector<20x16xf32> -> vector<20x16xf32>
    %264 = arith.truncf %248 : vector<20x16xf32> to vector<20x16xbf16>
    %cst_157 = arith.constant dense<0.000000e+00> : vector<20x16xf32>
    %265 = tpu.matmul %262, %264, %cst_157 {dimension_numbers = #tpu.dot_dimension_numbers<[1], [0], [0], [1], [0, 0, 1, 1], [], []>} : vector<20x20xbf16>, vector<20x16xbf16>, vector<20x16xf32> -> vector<20x16xf32>
    %266 = arith.addf %263, %265 : vector<20x16xf32>
    %c0_158 = arith.constant 0 : index
    %c0_159 = arith.constant 0 : index
    %267 = vector.load %arg13[%c0_158, %c0_159] : memref<20x1xf32, #tpu.memory_space<vmem>>, vector<20x1xf32>
    %268 = vector.broadcast %267 : vector<20x1xf32> to vector<20x16xf32>
    %269 = arith.addf %266, %268 : vector<20x16xf32>
    %cst_160 = arith.constant dense<0.000000e+00> : vector<20x16xf32>
    %270 = tpu.matmul %261, %5, %cst_160 {dimension_numbers = #tpu.dot_dimension_numbers<[1], [0], [0], [1], [0, 0, 1, 1], [], []>} : vector<20x5xbf16>, vector<5x16xbf16>, vector<20x16xf32> -> vector<20x16xf32>
    %271 = arith.truncf %260 : vector<20x16xf32> to vector<20x16xbf16>
    %cst_161 = arith.constant dense<0.000000e+00> : vector<20x16xf32>
    %272 = tpu.matmul %262, %271, %cst_161 {dimension_numbers = #tpu.dot_dimension_numbers<[1], [0], [0], [1], [0, 0, 1, 1], [], []>} : vector<20x20xbf16>, vector<20x16xbf16>, vector<20x16xf32> -> vector<20x16xf32>
    %273 = arith.addf %270, %272 : vector<20x16xf32>
    %c0_162 = arith.constant 0 : index
    %c0_163 = arith.constant 0 : index
    %274 = vector.load %arg13[%c0_162, %c0_163] : memref<20x1xf32, #tpu.memory_space<vmem>>, vector<20x1xf32>
    %275 = vector.broadcast %274 : vector<20x1xf32> to vector<20x16xf32>
    %276 = arith.addf %273, %275 : vector<20x16xf32>
    %cst_164 = arith.constant dense<0.000000e+00> : vector<20xf32>
    %277 = vector.multi_reduction <add>, %269, %cst_164 [1] : vector<20x16xf32> to vector<20xf32>
    %278 = vector.shape_cast %277 : vector<20xf32> to vector<20x1xf32>
    %279 = arith.mulf %269, %269 : vector<20x16xf32>
    %cst_165 = arith.constant dense<0.000000e+00> : vector<20xf32>
    %280 = vector.multi_reduction <add>, %279, %cst_165 [1] : vector<20x16xf32> to vector<20xf32>
    %281 = vector.shape_cast %280 : vector<20xf32> to vector<20x1xf32>
    %cst_166 = arith.constant dense<0.000000e+00> : vector<20xf32>
    %282 = vector.multi_reduction <add>, %276, %cst_166 [1] : vector<20x16xf32> to vector<20xf32>
    %283 = vector.shape_cast %282 : vector<20xf32> to vector<20x1xf32>
    %284 = arith.mulf %276, %276 : vector<20x16xf32>
    %cst_167 = arith.constant dense<0.000000e+00> : vector<20xf32>
    %285 = vector.multi_reduction <add>, %284, %cst_167 [1] : vector<20x16xf32> to vector<20xf32>
    %286 = vector.shape_cast %285 : vector<20xf32> to vector<20x1xf32>
    %287 = arith.addf %278, %283 : vector<20x1xf32>
    %288 = arith.addf %281, %286 : vector<20x1xf32>
    %cst_168 = arith.constant 3.125000e-02 : f32
    %289 = vector.broadcast %cst_168 : f32 to vector<20x1xf32>
    %290 = arith.mulf %287, %289 : vector<20x1xf32>
    %cst_169 = arith.constant 3.125000e-02 : f32
    %291 = vector.broadcast %cst_169 : f32 to vector<20x1xf32>
    %292 = arith.mulf %288, %291 : vector<20x1xf32>
    %293 = arith.mulf %290, %290 : vector<20x1xf32>
    %294 = arith.subf %292, %293 : vector<20x1xf32>
    %cst_170 = arith.constant 0.000000e+00 : f32
    %295 = vector.broadcast %cst_170 : f32 to vector<20x1xf32>
    %296 = arith.maximumf %294, %295 : vector<20x1xf32>
    %c0_171 = arith.constant 0 : index
    %c0_172 = arith.constant 0 : index
    %297 = vector.load %arg14[%c0_171, %c0_172] : memref<20x1xf32, #tpu.memory_space<vmem>>, vector<20x1xf32>
    %cst_173 = arith.constant 9.99999974E-6 : f32
    %298 = vector.broadcast %cst_173 : f32 to vector<20x1xf32>
    %299 = arith.addf %296, %298 : vector<20x1xf32>
    %300 = math.rsqrt %299 : vector<20x1xf32>
    %301 = arith.mulf %297, %300 : vector<20x1xf32>
    %302 = vector.broadcast %301 : vector<20x1xf32> to vector<20x16xf32>
    %303 = arith.mulf %269, %302 : vector<20x16xf32>
    %c0_174 = arith.constant 0 : index
    %c0_175 = arith.constant 0 : index
    %304 = vector.load %arg15[%c0_174, %c0_175] : memref<20x1xf32, #tpu.memory_space<vmem>>, vector<20x1xf32>
    %305 = arith.mulf %290, %301 : vector<20x1xf32>
    %306 = arith.subf %304, %305 : vector<20x1xf32>
    %307 = vector.broadcast %306 : vector<20x1xf32> to vector<20x16xf32>
    %308 = arith.addf %303, %307 : vector<20x16xf32>
    %cst_176 = arith.constant 0.000000e+00 : f32
    %309 = vector.broadcast %cst_176 : f32 to vector<20x16xf32>
    %310 = arith.maximumf %308, %309 : vector<20x16xf32>
    %c0_177 = arith.constant 0 : index
    %c0_178 = arith.constant 0 : index
    %c0_179 = arith.constant 0 : index
    %311 = vector.load %arg16[%c0_177, %c0_178, %c0_179] : memref<2x20x16xf32, #tpu.memory_space<vmem>>, vector<1x20x16xf32>
    %312 = vector.shape_cast %311 : vector<1x20x16xf32> to vector<20x16xf32>
    %313 = vector.shape_cast %310 : vector<20x16xf32> to vector<1x20x16xf32>
    tpu.vector_store %arg16[%c0_177, %c0_178, %c0_179], %313 {strides = array<i32>} : memref<2x20x16xf32, #tpu.memory_space<vmem>>, vector<1x20x16xf32>,
    %c0_180 = arith.constant 0 : index
    %c0_181 = arith.constant 0 : index
    %314 = vector.load %arg14[%c0_180, %c0_181] : memref<20x1xf32, #tpu.memory_space<vmem>>, vector<20x1xf32>
    %cst_182 = arith.constant 9.99999974E-6 : f32
    %315 = vector.broadcast %cst_182 : f32 to vector<20x1xf32>
    %316 = arith.addf %296, %315 : vector<20x1xf32>
    %317 = math.rsqrt %316 : vector<20x1xf32>
    %318 = arith.mulf %314, %317 : vector<20x1xf32>
    %319 = vector.broadcast %318 : vector<20x1xf32> to vector<20x16xf32>
    %320 = arith.mulf %276, %319 : vector<20x16xf32>
    %c0_183 = arith.constant 0 : index
    %c0_184 = arith.constant 0 : index
    %321 = vector.load %arg15[%c0_183, %c0_184] : memref<20x1xf32, #tpu.memory_space<vmem>>, vector<20x1xf32>
    %322 = arith.mulf %290, %318 : vector<20x1xf32>
    %323 = arith.subf %321, %322 : vector<20x1xf32>
    %324 = vector.broadcast %323 : vector<20x1xf32> to vector<20x16xf32>
    %325 = arith.addf %320, %324 : vector<20x16xf32>
    %cst_185 = arith.constant 0.000000e+00 : f32
    %326 = vector.broadcast %cst_185 : f32 to vector<20x16xf32>
    %327 = arith.maximumf %325, %326 : vector<20x16xf32>
    %c1_186 = arith.constant 1 : index
    %c0_187 = arith.constant 0 : index
    %c0_188 = arith.constant 0 : index
    %328 = vector.load %arg16[%c1_186, %c0_187, %c0_188] : memref<2x20x16xf32, #tpu.memory_space<vmem>>, vector<1x20x16xf32>
    %329 = vector.shape_cast %328 : vector<1x20x16xf32> to vector<20x16xf32>
    %330 = vector.shape_cast %327 : vector<20x16xf32> to vector<1x20x16xf32>
    tpu.vector_store %arg16[%c1_186, %c0_187, %c0_188], %330 {strides = array<i32>} : memref<2x20x16xf32, #tpu.memory_space<vmem>>, vector<1x20x16xf32>,
    return
  }
}

</mosaic_0001>

<llo_original>
// kernel: tpu_custom_call.1
$region0: #{tpu_custom_call.1}
  #allocation0 [shape = 'u32[]', space=smem, size = 0x4, offset = 0x4, fixed_abs, tag = 'smem constant byte address 0x4 - core index']
  #allocation1 [shape = 'u32[144,128]{1,0:T(1,128)}', space=vmem, size = 0x12000, scoped, tag = 'internal scratch']
  %s0 = inlined_call_operand.vmem [shape: f32[2,5,16], index: 0, kind: input, shape index: {}]
  %s1 = inlined_call_operand.vmem [shape: bf16[5,20,5], index: 1, kind: input, shape index: {}]
  %s2 = inlined_call_operand.vmem [shape: f32[20,1], index: 2, kind: input, shape index: {}]
  %s3 = inlined_call_operand.vmem [shape: f32[20,1], index: 3, kind: input, shape index: {}]
  %s4 = inlined_call_operand.vmem [shape: f32[20,1], index: 4, kind: input, shape index: {}]
  %s5 = inlined_call_operand.vmem [shape: bf16[5,20,20], index: 5, kind: input, shape index: {}]
  %s6 = inlined_call_operand.vmem [shape: f32[20,1], index: 6, kind: input, shape index: {}]
  %s7 = inlined_call_operand.vmem [shape: f32[20,1], index: 7, kind: input, shape index: {}]
  %s8 = inlined_call_operand.vmem [shape: f32[20,1], index: 8, kind: input, shape index: {}]
  %s9 = inlined_call_operand.vmem [shape: bf16[20,20], index: 9, kind: input, shape index: {}]
  %s10 = inlined_call_operand.vmem [shape: f32[20,1], index: 10, kind: input, shape index: {}]
  %s11 = inlined_call_operand.vmem [shape: bf16[20,5], index: 11, kind: input, shape index: {}]
  %s12 = inlined_call_operand.vmem [shape: bf16[20,20], index: 12, kind: input, shape index: {}]
  %s13 = inlined_call_operand.vmem [shape: f32[20,1], index: 13, kind: input, shape index: {}]
  %s14 = inlined_call_operand.vmem [shape: f32[20,1], index: 14, kind: input, shape index: {}]
  %s15 = inlined_call_operand.vmem [shape: f32[20,1], index: 15, kind: input, shape index: {}]
  %s16 = inlined_call_operand.vmem [shape: f32[2,20,16], index: 16, kind: output, shape index: {}]
  %s17 = sld [smem:[#allocation0]]
  $region74: #{tpu_custom_call.1} parent=0
    _
  %s19 = ssub.s32 1, %s17
  %s20 = scalar_select 0, %s19, %s17
  // Predicated region
  $region2: #{tpu_custom_call.1} parent=0 // pred_check
    _
  $region3: #{tpu_custom_call.1} parent=0 // pred_check_branch
    %22 = sbr.rel (0) target = $region5
  $region4: #{tpu_custom_call.1} parent=0 // pred_region
    _
  $region5: #{tpu_custom_call.1} parent=0 // pred_fallthru
    _
  // Predicated region
  $region6: #{tpu_custom_call.1} parent=0 // pred_check
    _
  $region7: #{tpu_custom_call.1} parent=0 // pred_check_branch
    %24 = sbr.rel (0) target = $region9
  $region8: #{tpu_custom_call.1} parent=0 // pred_region
    _
  $region9: #{tpu_custom_call.1} parent=0 // pred_fallthru
    _
  // Predicated region
  $region10: #{tpu_custom_call.1} parent=0 // pred_check
    _
  $region11: #{tpu_custom_call.1} parent=0 // pred_check_branch
    %26 = sbr.rel (0) target = $region13
  $region12: #{tpu_custom_call.1} parent=0 // pred_region
    _
  $region13: #{tpu_custom_call.1} parent=0 // pred_fallthru
    _
  // Predicated region
  $region14: #{tpu_custom_call.1} parent=0 // pred_check
    _
  $region15: #{tpu_custom_call.1} parent=0 // pred_check_branch
    %28 = sbr.rel (0) target = $region17
  $region16: #{tpu_custom_call.1} parent=0 // pred_region
    _
  $region17: #{tpu_custom_call.1} parent=0 // pred_fallthru
    _
  // Predicated region
  $region18: #{tpu_custom_call.1} parent=0 // pred_check
    _
  $region19: #{tpu_custom_call.1} parent=0 // pred_check_branch
    %30 = sbr.rel (0) target = $region21
  $region20: #{tpu_custom_call.1} parent=0 // pred_region
    _
  $region21: #{tpu_custom_call.1} parent=0 // pred_fallthru
    _
  // Predicated region
  $region22: #{tpu_custom_call.1} parent=0 // pred_check
    _
  $region23: #{tpu_custom_call.1} parent=0 // pred_check_branch
    %32 = sbr.rel (0) target = $region25
  $region24: #{tpu_custom_call.1} parent=0 // pred_region
    _
  $region25: #{tpu_custom_call.1} parent=0 // pred_fallthru
    _
  // Predicated region
  $region26: #{tpu_custom_call.1} parent=0 // pred_check
    _
  $region27: #{tpu_custom_call.1} parent=0 // pred_check_branch
    %34 = sbr.rel (0) target = $region29
  $region28: #{tpu_custom_call.1} parent=0 // pred_region
    _
  $region29: #{tpu_custom_call.1} parent=0 // pred_fallthru
    _
  // Predicated region
  $region30: #{tpu_custom_call.1} parent=0 // pred_check
    _
  $region31: #{tpu_custom_call.1} parent=0 // pred_check_branch
    %36 = sbr.rel (0) target = $region33
  $region32: #{tpu_custom_call.1} parent=0 // pred_region
    _
  $region33: #{tpu_custom_call.1} parent=0 // pred_fallthru
    _
  // Predicated region
  $region34: #{tpu_custom_call.1} parent=0 // pred_check
    _
  $region35: #{tpu_custom_call.1} parent=0 // pred_check_branch
    %38 = sbr.rel (0) target = $region37
  $region36: #{tpu_custom_call.1} parent=0 // pred_region
    _
  $region37: #{tpu_custom_call.1} parent=0 // pred_fallthru
    _
  // Predicated region
  $region38: #{tpu_custom_call.1} parent=0 // pred_check
    _
  $region39: #{tpu_custom_call.1} parent=0 // pred_check_branch
    %40 = sbr.rel (0) target = $region41
  $region40: #{tpu_custom_call.1} parent=0 // pred_region
    _
  $region41: #{tpu_custom_call.1} parent=0 // pred_fallthru
    _
  // Predicated region
  $region42: #{tpu_custom_call.1} parent=0 // pred_check
    _
  $region43: #{tpu_custom_call.1} parent=0 // pred_check_branch
    %42 = sbr.rel (0) target = $region45
  $region44: #{tpu_custom_call.1} parent=0 // pred_region
    _
  $region45: #{tpu_custom_call.1} parent=0 // pred_fallthru
    _
  // Predicated region
  $region46: #{tpu_custom_call.1} parent=0 // pred_check
    _
  $region47: #{tpu_custom_call.1} parent=0 // pred_check_branch
    %44 = sbr.rel (0) target = $region49
  $region48: #{tpu_custom_call.1} parent=0 // pred_region
    _
  $region49: #{tpu_custom_call.1} parent=0 // pred_fallthru
    _
  // Predicated region
  $region50: #{tpu_custom_call.1} parent=0 // pred_check
    _
  $region51: #{tpu_custom_call.1} parent=0 // pred_check_branch
    %46 = sbr.rel (0) target = $region53
  $region52: #{tpu_custom_call.1} parent=0 // pred_region
    _
  $region53: #{tpu_custom_call.1} parent=0 // pred_fallthru
    _
  // Predicated region
  $region54: #{tpu_custom_call.1} parent=0 // pred_check
    _
  $region55: #{tpu_custom_call.1} parent=0 // pred_check_branch
    %48 = sbr.rel (0) target = $region57
  $region56: #{tpu_custom_call.1} parent=0 // pred_region
    _
  $region57: #{tpu_custom_call.1} parent=0 // pred_fallthru
    _
  // Predicated region
  $region58: #{tpu_custom_call.1} parent=0 // pred_check
    _
  $region59: #{tpu_custom_call.1} parent=0 // pred_check_branch
    %50 = sbr.rel (0) target = $region61
  $region60: #{tpu_custom_call.1} parent=0 // pred_region
    _
  $region61: #{tpu_custom_call.1} parent=0 // pred_fallthru
    _
  // Predicated region
  $region62: #{tpu_custom_call.1} parent=0 // pred_check
    _
  $region63: #{tpu_custom_call.1} parent=0 // pred_check_branch
    %52 = sbr.rel (0) target = $region65
  $region64: #{tpu_custom_call.1} parent=0 // pred_region
    _
  $region65: #{tpu_custom_call.1} parent=0 // pred_fallthru
    _
  %v54 = vld [vmem:[%s0] sm:$0x1f]
  %v55 = vpack.c.bf16 %v54, %v54
  %s56 = scalar_lea.vmem %s0, 8
  %v57 = vld [vmem:[%s56] sm:$0x1f]
  %v58 = vpack.c.bf16 %v57, %v57
  %v59 = vld [vmem:[%s1] sm:$0xf]
  %v60 = vld [vmem:[%s1 + $0x4] sm:$0xf]
  %v61 = vld [vmem:[%s1 + $0x8] sm:$0x3]
  %63 = vrot.lane.b32.xlu0 %v55, 2
  %v64 = vpop.permute.xlu0 %63
  %vm65 = vcmask 15360
  %v68 = vsel %vm65, 0, %v64
  %s69 = scalar_lea.vmem %s1, 12
  %v70 = vld [vmem:[%s69] sm:$0xf]
  %v71 = vld [vmem:[%s69 + $0x4] sm:$0xf]
  %v72 = vld [vmem:[%s69 + $0x8] sm:$0x3]
  %73 = vrot.lane.b32.xlu0 %v55, 1
  %v74 = vpop.permute.xlu0 %73
  %vm75 = vcmask 7168
  %v77 = vsel %vm75, 0, %v74
  %v81 = vunpack.c.l.b16 %v70
  %v82 = vunpack.c.l.b16 %v71
  %v83 = vunpack.c.l.b16 %v72
  %v84 = vpack.c.b16 %v82, %v81
  %v85 = vpack.c.b16 %v83, %v83
  %vm86 = vcmask 39936
  %v88 = vsel %vm86, %v84, 0
  %v91 = vsel %vm86, %v85, 0
  %vm93 = vcmask 1041408
  %vm94 = vcmask 1042432
  %v95 = vsel %vm93, 4294967295, 65535
  %v96 = vsel %vm94, %v95, 0
  %v97 = vand.u32 %v77, %v96
  %99 = vmatprep.subr.bf16.mxu0 0
  %100 = vmatpush1.bf16.msra.mxu0 0
  %101 = vmatprep.subr.bf16.mxu0 0
  %102 = vmatpush1.bf16.msra.mxu0 0
  %103 = vmatprep.subr.bf16.mxu0 0
  %104 = vmatpush1.bf16.msra.mxu0 0
  %105 = vmatprep.subr.bf16.mxu0 0
  %106 = vmatpush1.bf16.msra.mxu0 0
  %107 = vmatprep.subr.bf16.mxu0 0
  %108 = vmatpush1.bf16.msra.mxu0 0
  %109 = vmatprep.subr.bf16.mxu0 0
  %110 = vmatpush1.bf16.msra.mxu0 0
  %111 = vmatprep.subr.bf16.mxu0 0
  %112 = vmatpush1.bf16.msra.mxu0 0
  %113 = vmatprep.subr.bf16.mxu0 0
  %114 = vmatpush1.bf16.msra.mxu0 %v97
  %115 = vmatprep.subr.bf16.mxu0 0
  %116 = vmatpush2.bf16.msra.mxu0 0
  %117 = vmatprep.subr.bf16.mxu0 0
  %118 = vmatpush2.bf16.msra.mxu0 0
  %119 = vmatprep.subr.bf16.mxu0 0
  %120 = vmatpush2.bf16.msra.mxu0 0
  %121 = vmatprep.subr.bf16.mxu0 0
  %122 = vmatpush2.bf16.msra.mxu0 0
  %123 = vmatprep.subr.bf16.mxu0 0
  %124 = vmatpush2.bf16.msra.mxu0 0
  %125 = vmatprep.subr.bf16.mxu0 0
  %126 = vmatpush2.bf16.msra.mxu0 0
  %127 = vmatprep.subr.bf16.mxu0 0
  %128 = vmatpush2.bf16.msra.mxu0 0
  %129 = vmatprep.subr.bf16.mxu0 0
  %130 = vmatpush2.bf16.msra.mxu0 0
  %131 = vmatprep.mubr.bf16.mxu0 0
  %132 = vmatmul.mubr.bf16.gmra.mxu0 %v88
  %v133 = vpop.f32.mrf.mxu0
  %v134 = vadd.f32 0.0, %v133
  %v135 = vpop.f32.mrf.mxu0
  %v136 = vpop.f32.mrf.mxu0
  %v137 = vadd.f32 0.0, %v136
  %v138 = vpop.f32.mrf.mxu0
  %139 = vmatprep.mubr.bf16.mxu0 0
  %140 = vmatmul.mubr.bf16.gmra.mxu0 %v91
  %v141 = vpop.f32.mrf.mxu0
  %v142 = vadd.f32 0.0, %v141
  %v143 = vpop.f32.mrf.mxu0
  %v144 = vpop.f32.mrf.mxu0
  %v145 = vpop.f32.mrf.mxu0
  %146 = vdwg.mxu0
  %v150 = vunpack.c.l.b16 %v59
  %v151 = vunpack.c.l.b16 %v60
  %v152 = vunpack.c.l.b16 %v61
  %v153 = vpack.c.b16 %v151, %v150
  %v154 = vpack.c.b16 %v152, %v152
  %v156 = vsel %vm86, %v153, 0
  %v159 = vsel %vm86, %v154, 0
  %v161 = vand.u32 %v68, %v96
  %163 = vmatprep.subr.bf16.mxu0 0
  %164 = vmatpush1.bf16.msra.mxu0 0
  %165 = vmatprep.subr.bf16.mxu0 0
  %166 = vmatpush1.bf16.msra.mxu0 0
  %167 = vmatprep.subr.bf16.mxu0 0
  %168 = vmatpush1.bf16.msra.mxu0 0
  %169 = vmatprep.subr.bf16.mxu0 0
  %170 = vmatpush1.bf16.msra.mxu0 0
  %171 = vmatprep.subr.bf16.mxu0 0
  %172 = vmatpush1.bf16.msra.mxu0 0
  %173 = vmatprep.subr.bf16.mxu0 0
  %174 = vmatpush1.bf16.msra.mxu0 0
  %175 = vmatprep.subr.bf16.mxu0 0
  %176 = vmatpush1.bf16.msra.mxu0 0
  %177 = vmatprep.subr.bf16.mxu0 0
  %178 = vmatpush1.bf16.msra.mxu0 %v161
  %179 = vmatprep.subr.bf16.mxu0 0
  %180 = vmatpush2.bf16.msra.mxu0 0
  %181 = vmatprep.subr.bf16.mxu0 0
  %182 = vmatpush2.bf16.msra.mxu0 0
  %183 = vmatprep.subr.bf16.mxu0 0
  %184 = vmatpush2.bf16.msra.mxu0 0
  %185 = vmatprep.subr.bf16.mxu0 0
  %186 = vmatpush2.bf16.msra.mxu0 0
  %187 = vmatprep.subr.bf16.mxu0 0
  %188 = vmatpush2.bf16.msra.mxu0 0
  %189 = vmatprep.subr.bf16.mxu0 0
  %190 = vmatpush2.bf16.msra.mxu0 0
  %191 = vmatprep.subr.bf16.mxu0 0
  %192 = vmatpush2.bf16.msra.mxu0 0
  %193 = vmatprep.subr.bf16.mxu0 0
  %194 = vmatpush2.bf16.msra.mxu0 0
  %195 = vmatprep.mubr.bf16.mxu0 0
  %196 = vmatmul.mubr.bf16.gmra.mxu0 %v156
  %v197 = vpop.f32.mrf.mxu0
  %v198 = vadd.f32 %v134, %v197
  %v199 = vpop.f32.mrf.mxu0
  %v200 = vpop.f32.mrf.mxu0
  %v201 = vadd.f32 %v137, %v200
  %v202 = vpop.f32.mrf.mxu0
  %203 = vmatprep.mubr.bf16.mxu0 0
  %204 = vmatmul.mubr.bf16.gmra.mxu0 %v159
  %v205 = vpop.f32.mrf.mxu0
  %v206 = vadd.f32 %v142, %v205
  %v207 = vpop.f32.mrf.mxu0
  %v208 = vpop.f32.mrf.mxu0
  %v209 = vpop.f32.mrf.mxu0
  %210 = vdwg.mxu0
  %s211 = scalar_lea.vmem %s1, 24
  %v212 = vld [vmem:[%s211] sm:$0xf]
  %v213 = vld [vmem:[%s211 + $0x4] sm:$0xf]
  %v214 = vld [vmem:[%s211 + $0x8] sm:$0x3]
  %v218 = vunpack.c.l.b16 %v212
  %v219 = vunpack.c.l.b16 %v213
  %v220 = vunpack.c.l.b16 %v214
  %v221 = vpack.c.b16 %v219, %v218
  %v222 = vpack.c.b16 %v220, %v220
  %v224 = vsel %vm86, %v221, 0
  %v227 = vsel %vm86, %v222, 0
  %v230 = vand.u32 %v55, %v96
  %232 = vmatprep.subr.bf16.mxu0 0
  %233 = vmatpush1.bf16.msra.mxu0 0
  %234 = vmatprep.subr.bf16.mxu0 0
  %235 = vmatpush1.bf16.msra.mxu0 0
  %236 = vmatprep.subr.bf16.mxu0 0
  %237 = vmatpush1.bf16.msra.mxu0 0
  %238 = vmatprep.subr.bf16.mxu0 0
  %239 = vmatpush1.bf16.msra.mxu0 0
  %240 = vmatprep.subr.bf16.mxu0 0
  %241 = vmatpush1.bf16.msra.mxu0 0
  %242 = vmatprep.subr.bf16.mxu0 0
  %243 = vmatpush1.bf16.msra.mxu0 0
  %244 = vmatprep.subr.bf16.mxu0 0
  %245 = vmatpush1.bf16.msra.mxu0 0
  %246 = vmatprep.subr.bf16.mxu0 0
  %247 = vmatpush1.bf16.msra.mxu0 %v230
  %248 = vmatprep.subr.bf16.mxu0 0
  %249 = vmatpush2.bf16.msra.mxu0 0
  %250 = vmatprep.subr.bf16.mxu0 0
  %251 = vmatpush2.bf16.msra.mxu0 0
  %252 = vmatprep.subr.bf16.mxu0 0
  %253 = vmatpush2.bf16.msra.mxu0 0
  %254 = vmatprep.subr.bf16.mxu0 0
  %255 = vmatpush2.bf16.msra.mxu0 0
  %256 = vmatprep.subr.bf16.mxu0 0
  %257 = vmatpush2.bf16.msra.mxu0 0
  %258 = vmatprep.subr.bf16.mxu0 0
  %259 = vmatpush2.bf16.msra.mxu0 0
  %260 = vmatprep.subr.bf16.mxu0 0
  %261 = vmatpush2.bf16.msra.mxu0 0
  %262 = vmatprep.subr.bf16.mxu0 0
  %263 = vmatpush2.bf16.msra.mxu0 0
  %264 = vmatprep.mubr.bf16.mxu0 0
  %265 = vmatmul.mubr.bf16.gmra.mxu0 %v224
  %v266 = vpop.f32.mrf.mxu0
  %v267 = vadd.f32 0.0, %v266
  %v268 = vpop.f32.mrf.mxu0
  %v269 = vpop.f32.mrf.mxu0
  %v270 = vadd.f32 0.0, %v269
  %v271 = vpop.f32.mrf.mxu0
  %272 = vmatprep.mubr.bf16.mxu0 0
  %273 = vmatmul.mubr.bf16.gmra.mxu0 %v227
  %v274 = vpop.f32.mrf.mxu0
  %v275 = vadd.f32 0.0, %v274
  %v276 = vpop.f32.mrf.mxu0
  %v277 = vpop.f32.mrf.mxu0
  %v278 = vpop.f32.mrf.mxu0
  %279 = vdwg.mxu0
  %v280 = vadd.f32 %v198, %v267
  %v281 = vadd.f32 %v201, %v270
  %v282 = vadd.f32 %v206, %v275
  %s283 = scalar_lea.vmem %s1, 36
  %v284 = vld [vmem:[%s283] sm:$0xf]
  %v285 = vld [vmem:[%s283 + $0x4] sm:$0xf]
  %v286 = vld [vmem:[%s283 + $0x8] sm:$0x3]
  %287 = vrot.lane.b32.xlu0 %v55, 127
  %v288 = vpop.permute.xlu0 %287
  %vm289 = vcmask 121856
  %v291 = vsel %vm289, %v288, 0
  %v295 = vunpack.c.l.b16 %v284
  %v296 = vunpack.c.l.b16 %v285
  %v297 = vunpack.c.l.b16 %v286
  %v298 = vpack.c.b16 %v296, %v295
  %v299 = vpack.c.b16 %v297, %v297
  %v301 = vsel %vm86, %v298, 0
  %v304 = vsel %vm86, %v299, 0
  %v306 = vand.u32 %v291, %v96
  %308 = vmatprep.subr.bf16.mxu0 0
  %309 = vmatpush1.bf16.msra.mxu0 0
  %310 = vmatprep.subr.bf16.mxu0 0
  %311 = vmatpush1.bf16.msra.mxu0 0
  %312 = vmatprep.subr.bf16.mxu0 0
  %313 = vmatpush1.bf16.msra.mxu0 0
  %314 = vmatprep.subr.bf16.mxu0 0
  %315 = vmatpush1.bf16.msra.mxu0 0
  %316 = vmatprep.subr.bf16.mxu0 0
  %317 = vmatpush1.bf16.msra.mxu0 0
  %318 = vmatprep.subr.bf16.mxu0 0
  %319 = vmatpush1.bf16.msra.mxu0 0
  %320 = vmatprep.subr.bf16.mxu0 0
  %321 = vmatpush1.bf16.msra.mxu0 0
  %322 = vmatprep.subr.bf16.mxu0 0
  %323 = vmatpush1.bf16.msra.mxu0 %v306
  %324 = vmatprep.subr.bf16.mxu0 0
  %325 = vmatpush2.bf16.msra.mxu0 0
  %326 = vmatprep.subr.bf16.mxu0 0
  %327 = vmatpush2.bf16.msra.mxu0 0
  %328 = vmatprep.subr.bf16.mxu0 0
  %329 = vmatpush2.bf16.msra.mxu0 0
  %330 = vmatprep.subr.bf16.mxu0 0
  %331 = vmatpush2.bf16.msra.mxu0 0
  %332 = vmatprep.subr.bf16.mxu0 0
  %333 = vmatpush2.bf16.msra.mxu0 0
  %334 = vmatprep.subr.bf16.mxu0 0
  %335 = vmatpush2.bf16.msra.mxu0 0
  %336 = vmatprep.subr.bf16.mxu0 0
  %337 = vmatpush2.bf16.msra.mxu0 0
  %338 = vmatprep.subr.bf16.mxu0 0
  %339 = vmatpush2.bf16.msra.mxu0 0
  %340 = vmatprep.mubr.bf16.mxu0 0
  %341 = vmatmul.mubr.bf16.gmra.mxu0 %v301
  %v342 = vpop.f32.mrf.mxu0
  %v343 = vadd.f32 0.0, %v342
  %v344 = vpop.f32.mrf.mxu0
  %v345 = vpop.f32.mrf.mxu0
  %v346 = vadd.f32 0.0, %v345
  %v347 = vpop.f32.mrf.mxu0
  %348 = vmatprep.mubr.bf16.mxu0 0
  %349 = vmatmul.mubr.bf16.gmra.mxu0 %v304
  %v350 = vpop.f32.mrf.mxu0
  %v351 = vadd.f32 0.0, %v350
  %v352 = vpop.f32.mrf.mxu0
  %v353 = vpop.f32.mrf.mxu0
  %v354 = vpop.f32.mrf.mxu0
  %355 = vdwg.mxu0
  %v356 = vadd.f32 %v280, %v343
  %v357 = vadd.f32 %v281, %v346
  %v358 = vadd.f32 %v282, %v351
  %s359 = scalar_lea.vmem %s1, 48
  %v360 = vld [vmem:[%s359] sm:$0xf]
  %v361 = vld [vmem:[%s359 + $0x4] sm:$0xf]
  %v362 = vld [vmem:[%s359 + $0x8] sm:$0x3]
  %363 = vrot.lane.b32.xlu0 %v55, 126
  %v364 = vpop.permute.xlu0 %363
  %vm365 = vcmask 113664
  %v367 = vsel %vm365, %v364, 0
  %v371 = vunpack.c.l.b16 %v360
  %v372 = vunpack.c.l.b16 %v361
  %v373 = vunpack.c.l.b16 %v362
  %v374 = vpack.c.b16 %v372, %v371
  %v375 = vpack.c.b16 %v373, %v373
  %v377 = vsel %vm86, %v374, 0
  %v380 = vsel %vm86, %v375, 0
  %v382 = vand.u32 %v367, %v96
  %384 = vmatprep.subr.bf16.mxu0 0
  %385 = vmatpush1.bf16.msra.mxu0 0
  %386 = vmatprep.subr.bf16.mxu0 0
  %387 = vmatpush1.bf16.msra.mxu0 0
  %388 = vmatprep.subr.bf16.mxu0 0
  %389 = vmatpush1.bf16.msra.mxu0 0
  %390 = vmatprep.subr.bf16.mxu0 0
  %391 = vmatpush1.bf16.msra.mxu0 0
  %392 = vmatprep.subr.bf16.mxu0 0
  %393 = vmatpush1.bf16.msra.mxu0 0
  %394 = vmatprep.subr.bf16.mxu0 0
  %395 = vmatpush1.bf16.msra.mxu0 0
  %396 = vmatprep.subr.bf16.mxu0 0
  %397 = vmatpush1.bf16.msra.mxu0 0
  %398 = vmatprep.subr.bf16.mxu0 0
  %399 = vmatpush1.bf16.msra.mxu0 %v382
  %400 = vmatprep.subr.bf16.mxu0 0
  %401 = vmatpush2.bf16.msra.mxu0 0
  %402 = vmatprep.subr.bf16.mxu0 0
  %403 = vmatpush2.bf16.msra.mxu0 0
  %404 = vmatprep.subr.bf16.mxu0 0
  %405 = vmatpush2.bf16.msra.mxu0 0
  %406 = vmatprep.subr.bf16.mxu0 0
  %407 = vmatpush2.bf16.msra.mxu0 0
  %408 = vmatprep.subr.bf16.mxu0 0
  %409 = vmatpush2.bf16.msra.mxu0 0
  %410 = vmatprep.subr.bf16.mxu0 0
  %411 = vmatpush2.bf16.msra.mxu0 0
  %412 = vmatprep.subr.bf16.mxu0 0
  %413 = vmatpush2.bf16.msra.mxu0 0
  %414 = vmatprep.subr.bf16.mxu0 0
  %415 = vmatpush2.bf16.msra.mxu0 0
  %416 = vmatprep.mubr.bf16.mxu0 0
  %417 = vmatmul.mubr.bf16.gmra.mxu0 %v377
  %v418 = vpop.f32.mrf.mxu0
  %v419 = vadd.f32 0.0, %v418
  %v420 = vpop.f32.mrf.mxu0
  %v421 = vpop.f32.mrf.mxu0
  %v422 = vadd.f32 0.0, %v421
  %v423 = vpop.f32.mrf.mxu0
  %424 = vmatprep.mubr.bf16.mxu0 0
  %425 = vmatmul.mubr.bf16.gmra.mxu0 %v380
  %v426 = vpop.f32.mrf.mxu0
  %v427 = vadd.f32 0.0, %v426
  %v428 = vpop.f32.mrf.mxu0
  %v429 = vpop.f32.mrf.mxu0
  %v430 = vpop.f32.mrf.mxu0
  %431 = vdwg.mxu0
  %v432 = vadd.f32 %v356, %v419
  %v433 = vadd.f32 %v357, %v422
  %v434 = vadd.f32 %v358, %v427
  %v435 = vld [vmem:[%s2] sm:$0xff]
  %v436 = vld [vmem:[%s2 + $0x8] sm:$0xff]
  %v437 = vld [vmem:[%s2 + $0x10] sm:$0xf]
  %439 = vset.pattern.permute.xlu0 0
  %440 = vperm.xlu0 %439, %v435
  %v441 = vpop.permute.xlu0 %440
  %444 = vset.pattern.permute.xlu0 0
  %445 = vperm.xlu0 %444, %v436
  %v446 = vpop.permute.xlu0 %445
  %449 = vset.pattern.permute.xlu0 0
  %450 = vperm.xlu0 %449, %v437
  %v451 = vpop.permute.xlu0 %450
  %v453 = vadd.f32 %v432, %v441
  %v454 = vadd.f32 %v433, %v446
  %v455 = vadd.f32 %v434, %v451
  %457 = vrot.lane.b32.xlu0 %v58, 2
  %v458 = vpop.permute.xlu0 %457
  %v460 = vsel %vm65, 0, %v458
  %461 = vrot.lane.b32.xlu0 %v58, 1
  %v462 = vpop.permute.xlu0 %461
  %v464 = vsel %vm75, 0, %v462
  %v465 = vand.u32 %v464, %v96
  %467 = vmatprep.subr.bf16.mxu0 0
  %468 = vmatpush1.bf16.msra.mxu0 0
  %469 = vmatprep.subr.bf16.mxu0 0
  %470 = vmatpush1.bf16.msra.mxu0 0
  %471 = vmatprep.subr.bf16.mxu0 0
  %472 = vmatpush1.bf16.msra.mxu0 0
  %473 = vmatprep.subr.bf16.mxu0 0
  %474 = vmatpush1.bf16.msra.mxu0 0
  %475 = vmatprep.subr.bf16.mxu0 0
  %476 = vmatpush1.bf16.msra.mxu0 0
  %477 = vmatprep.subr.bf16.mxu0 0
  %478 = vmatpush1.bf16.msra.mxu0 0
  %479 = vmatprep.subr.bf16.mxu0 0
  %480 = vmatpush1.bf16.msra.mxu0 0
  %481 = vmatprep.subr.bf16.mxu0 0
  %482 = vmatpush1.bf16.msra.mxu0 %v465
  %483 = vmatprep.subr.bf16.mxu0 0
  %484 = vmatpush2.bf16.msra.mxu0 0
  %485 = vmatprep.subr.bf16.mxu0 0
  %486 = vmatpush2.bf16.msra.mxu0 0
  %487 = vmatprep.subr.bf16.mxu0 0
  %488 = vmatpush2.bf16.msra.mxu0 0
  %489 = vmatprep.subr.bf16.mxu0 0
  %490 = vmatpush2.bf16.msra.mxu0 0
  %491 = vmatprep.subr.bf16.mxu0 0
  %492 = vmatpush2.bf16.msra.mxu0 0
  %493 = vmatprep.subr.bf16.mxu0 0
  %494 = vmatpush2.bf16.msra.mxu0 0
  %495 = vmatprep.subr.bf16.mxu0 0
  %496 = vmatpush2.bf16.msra.mxu0 0
  %497 = vmatprep.subr.bf16.mxu0 0
  %498 = vmatpush2.bf16.msra.mxu0 0
  %499 = vmatprep.mubr.bf16.mxu0 0
  %500 = vmatmul.mubr.bf16.gmra.mxu0 %v88
  %v501 = vpop.f32.mrf.mxu0
  %v502 = vadd.f32 0.0, %v501
  %v503 = vpop.f32.mrf.mxu0
  %v504 = vpop.f32.mrf.mxu0
  %v505 = vadd.f32 0.0, %v504
  %v506 = vpop.f32.mrf.mxu0
  %507 = vmatprep.mubr.bf16.mxu0 0
  %508 = vmatmul.mubr.bf16.gmra.mxu0 %v91
  %v509 = vpop.f32.mrf.mxu0
  %v510 = vadd.f32 0.0, %v509
  %v511 = vpop.f32.mrf.mxu0
  %v512 = vpop.f32.mrf.mxu0
  %v513 = vpop.f32.mrf.mxu0
  %514 = vdwg.mxu0
  %v515 = vand.u32 %v460, %v96
  %517 = vmatprep.subr.bf16.mxu0 0
  %518 = vmatpush1.bf16.msra.mxu0 0
  %519 = vmatprep.subr.bf16.mxu0 0
  %520 = vmatpush1.bf16.msra.mxu0 0
  %521 = vmatprep.subr.bf16.mxu0 0
  %522 = vmatpush1.bf16.msra.mxu0 0
  %523 = vmatprep.subr.bf16.mxu0 0
  %524 = vmatpush1.bf16.msra.mxu0 0
  %525 = vmatprep.subr.bf16.mxu0 0
  %526 = vmatpush1.bf16.msra.mxu0 0
  %527 = vmatprep.subr.bf16.mxu0 0
  %528 = vmatpush1.bf16.msra.mxu0 0
  %529 = vmatprep.subr.bf16.mxu0 0
  %530 = vmatpush1.bf16.msra.mxu0 0
  %531 = vmatprep.subr.bf16.mxu0 0
  %532 = vmatpush1.bf16.msra.mxu0 %v515
  %533 = vmatprep.subr.bf16.mxu0 0
  %534 = vmatpush2.bf16.msra.mxu0 0
  %535 = vmatprep.subr.bf16.mxu0 0
  %536 = vmatpush2.bf16.msra.mxu0 0
  %537 = vmatprep.subr.bf16.mxu0 0
  %538 = vmatpush2.bf16.msra.mxu0 0
  %539 = vmatprep.subr.bf16.mxu0 0
  %540 = vmatpush2.bf16.msra.mxu0 0
  %541 = vmatprep.subr.bf16.mxu0 0
  %542 = vmatpush2.bf16.msra.mxu0 0
  %543 = vmatprep.subr.bf16.mxu0 0
  %544 = vmatpush2.bf16.msra.mxu0 0
  %545 = vmatprep.subr.bf16.mxu0 0
  %546 = vmatpush2.bf16.msra.mxu0 0
  %547 = vmatprep.subr.bf16.mxu0 0
  %548 = vmatpush2.bf16.msra.mxu0 0
  %549 = vmatprep.mubr.bf16.mxu0 0
  %550 = vmatmul.mubr.bf16.gmra.mxu0 %v156
  %v551 = vpop.f32.mrf.mxu0
  %v552 = vadd.f32 %v502, %v551
  %v553 = vpop.f32.mrf.mxu0
  %v554 = vpop.f32.mrf.mxu0
  %v555 = vadd.f32 %v505, %v554
  %v556 = vpop.f32.mrf.mxu0
  %557 = vmatprep.mubr.bf16.mxu0 0
  %558 = vmatmul.mubr.bf16.gmra.mxu0 %v159
  %v559 = vpop.f32.mrf.mxu0
  %v560 = vadd.f32 %v510, %v559
  %v561 = vpop.f32.mrf.mxu0
  %v562 = vpop.f32.mrf.mxu0
  %v563 = vpop.f32.mrf.mxu0
  %564 = vdwg.mxu0
  %v566 = vand.u32 %v58, %v96
  %568 = vmatprep.subr.bf16.mxu0 0
  %569 = vmatpush1.bf16.msra.mxu0 0
  %570 = vmatprep.subr.bf16.mxu0 0
  %571 = vmatpush1.bf16.msra.mxu0 0
  %572 = vmatprep.subr.bf16.mxu0 0
  %573 = vmatpush1.bf16.msra.mxu0 0
  %574 = vmatprep.subr.bf16.mxu0 0
  %575 = vmatpush1.bf16.msra.mxu0 0
  %576 = vmatprep.subr.bf16.mxu0 0
  %577 = vmatpush1.bf16.msra.mxu0 0
  %578 = vmatprep.subr.bf16.mxu0 0
  %579 = vmatpush1.bf16.msra.mxu0 0
  %580 = vmatprep.subr.bf16.mxu0 0
  %581 = vmatpush1.bf16.msra.mxu0 0
  %582 = vmatprep.subr.bf16.mxu0 0
  %583 = vmatpush1.bf16.msra.mxu0 %v566
  %584 = vmatprep.subr.bf16.mxu0 0
  %585 = vmatpush2.bf16.msra.mxu0 0
  %586 = vmatprep.subr.bf16.mxu0 0
  %587 = vmatpush2.bf16.msra.mxu0 0
  %588 = vmatprep.subr.bf16.mxu0 0
  %589 = vmatpush2.bf16.msra.mxu0 0
  %590 = vmatprep.subr.bf16.mxu0 0
  %591 = vmatpush2.bf16.msra.mxu0 0
  %592 = vmatprep.subr.bf16.mxu0 0
  %593 = vmatpush2.bf16.msra.mxu0 0
  %594 = vmatprep.subr.bf16.mxu0 0
  %595 = vmatpush2.bf16.msra.mxu0 0
  %596 = vmatprep.subr.bf16.mxu0 0
  %597 = vmatpush2.bf16.msra.mxu0 0
  %598 = vmatprep.subr.bf16.mxu0 0
  %599 = vmatpush2.bf16.msra.mxu0 0
  %600 = vmatprep.mubr.bf16.mxu0 0
  %601 = vmatmul.mubr.bf16.gmra.mxu0 %v224
  %v602 = vpop.f32.mrf.mxu0
  %v603 = vadd.f32 0.0, %v602
  %v604 = vpop.f32.mrf.mxu0
  %v605 = vpop.f32.mrf.mxu0
  %v606 = vadd.f32 0.0, %v605
  %v607 = vpop.f32.mrf.mxu0
  %608 = vmatprep.mubr.bf16.mxu0 0
  %609 = vmatmul.mubr.bf16.gmra.mxu0 %v227
  %v610 = vpop.f32.mrf.mxu0
  %v611 = vadd.f32 0.0, %v610
  %v612 = vpop.f32.mrf.mxu0
  %v613 = vpop.f32.mrf.mxu0
  %v614 = vpop.f32.mrf.mxu0
  %615 = vdwg.mxu0
  %v616 = vadd.f32 %v552, %v603
  %v617 = vadd.f32 %v555, %v606
  %v618 = vadd.f32 %v560, %v611
  %619 = vrot.lane.b32.xlu0 %v58, 127
  %v620 = vpop.permute.xlu0 %619
  %v622 = vsel %vm289, %v620, 0
  %v623 = vand.u32 %v622, %v96
  %625 = vmatprep.subr.bf16.mxu0 0
  %626 = vmatpush1.bf16.msra.mxu0 0
  %627 = vmatprep.subr.bf16.mxu0 0
  %628 = vmatpush1.bf16.msra.mxu0 0
  %629 = vmatprep.subr.bf16.mxu0 0
  %630 = vmatpush1.bf16.msra.mxu0 0
  %631 = vmatprep.subr.bf16.mxu0 0
  %632 = vmatpush1.bf16.msra.mxu0 0
  %633 = vmatprep.subr.bf16.mxu0 0
  %634 = vmatpush1.bf16.msra.mxu0 0
  %635 = vmatprep.subr.bf16.mxu0 0
  %636 = vmatpush1.bf16.msra.mxu0 0
  %637 = vmatprep.subr.bf16.mxu0 0
  %638 = vmatpush1.bf16.msra.mxu0 0
  %639 = vmatprep.subr.bf16.mxu0 0
  %640 = vmatpush1.bf16.msra.mxu0 %v623
  %641 = vmatprep.subr.bf16.mxu0 0
  %642 = vmatpush2.bf16.msra.mxu0 0
  %643 = vmatprep.subr.bf16.mxu0 0
  %644 = vmatpush2.bf16.msra.mxu0 0
  %645 = vmatprep.subr.bf16.mxu0 0
  %646 = vmatpush2.bf16.msra.mxu0 0
  %647 = vmatprep.subr.bf16.mxu0 0
  %648 = vmatpush2.bf16.msra.mxu0 0
  %649 = vmatprep.subr.bf16.mxu0 0
  %650 = vmatpush2.bf16.msra.mxu0 0
  %651 = vmatprep.subr.bf16.mxu0 0
  %652 = vmatpush2.bf16.msra.mxu0 0
  %653 = vmatprep.subr.bf16.mxu0 0
  %654 = vmatpush2.bf16.msra.mxu0 0
  %655 = vmatprep.subr.bf16.mxu0 0
  %656 = vmatpush2.bf16.msra.mxu0 0
  %657 = vmatprep.mubr.bf16.mxu0 0
  %658 = vmatmul.mubr.bf16.gmra.mxu0 %v301
  %v659 = vpop.f32.mrf.mxu0
  %v660 = vadd.f32 0.0, %v659
  %v661 = vpop.f32.mrf.mxu0
  %v662 = vpop.f32.mrf.mxu0
  %v663 = vadd.f32 0.0, %v662
  %v664 = vpop.f32.mrf.mxu0
  %665 = vmatprep.mubr.bf16.mxu0 0
  %666 = vmatmul.mubr.bf16.gmra.mxu0 %v304
  %v667 = vpop.f32.mrf.mxu0
  %v668 = vadd.f32 0.0, %v667
  %v669 = vpop.f32.mrf.mxu0
  %v670 = vpop.f32.mrf.mxu0
  %v671 = vpop.f32.mrf.mxu0
  %672 = vdwg.mxu0
  %v673 = vadd.f32 %v616, %v660
  %v674 = vadd.f32 %v617, %v663
  %v675 = vadd.f32 %v618, %v668
  %676 = vrot.lane.b32.xlu0 %v58, 126
  %v677 = vpop.permute.xlu0 %676
  %v679 = vsel %vm365, %v677, 0
  %v680 = vand.u32 %v679, %v96
  %682 = vmatprep.subr.bf16.mxu0 0
  %683 = vmatpush1.bf16.msra.mxu0 0
  %684 = vmatprep.subr.bf16.mxu0 0
  %685 = vmatpush1.bf16.msra.mxu0 0
  %686 = vmatprep.subr.bf16.mxu0 0
  %687 = vmatpush1.bf16.msra.mxu0 0
  %688 = vmatprep.subr.bf16.mxu0 0
  %689 = vmatpush1.bf16.msra.mxu0 0
  %690 = vmatprep.subr.bf16.mxu0 0
  %691 = vmatpush1.bf16.msra.mxu0 0
  %692 = vmatprep.subr.bf16.mxu0 0
  %693 = vmatpush1.bf16.msra.mxu0 0
  %694 = vmatprep.subr.bf16.mxu0 0
  %695 = vmatpush1.bf16.msra.mxu0 0
  %696 = vmatprep.subr.bf16.mxu0 0
  %697 = vmatpush1.bf16.msra.mxu0 %v680
  %698 = vmatprep.subr.bf16.mxu0 0
  %699 = vmatpush2.bf16.msra.mxu0 0
  %700 = vmatprep.subr.bf16.mxu0 0
  %701 = vmatpush2.bf16.msra.mxu0 0
  %702 = vmatprep.subr.bf16.mxu0 0
  %703 = vmatpush2.bf16.msra.mxu0 0
  %704 = vmatprep.subr.bf16.mxu0 0
  %705 = vmatpush2.bf16.msra.mxu0 0
  %706 = vmatprep.subr.bf16.mxu0 0
  %707 = vmatpush2.bf16.msra.mxu0 0
  %708 = vmatprep.subr.bf16.mxu0 0
  %709 = vmatpush2.bf16.msra.mxu0 0
  %710 = vmatprep.subr.bf16.mxu0 0
  %711 = vmatpush2.bf16.msra.mxu0 0
  %712 = vmatprep.subr.bf16.mxu0 0
  %713 = vmatpush2.bf16.msra.mxu0 0
  %714 = vmatprep.mubr.bf16.mxu0 0
  %715 = vmatmul.mubr.bf16.gmra.mxu0 %v377
  %v716 = vpop.f32.mrf.mxu0
  %v717 = vadd.f32 0.0, %v716
  %v718 = vpop.f32.mrf.mxu0
  %v719 = vpop.f32.mrf.mxu0
  %v720 = vadd.f32 0.0, %v719
  %v721 = vpop.f32.mrf.mxu0
  %722 = vmatprep.mubr.bf16.mxu0 0
  %723 = vmatmul.mubr.bf16.gmra.mxu0 %v380
  %v724 = vpop.f32.mrf.mxu0
  %v725 = vadd.f32 0.0, %v724
  %v726 = vpop.f32.mrf.mxu0
  %v727 = vpop.f32.mrf.mxu0
  %v728 = vpop.f32.mrf.mxu0
  %729 = vdwg.mxu0
  %v730 = vadd.f32 %v673, %v717
  %v731 = vadd.f32 %v674, %v720
  %v732 = vadd.f32 %v675, %v725
  %v733 = vadd.f32 %v730, %v441
  %v734 = vadd.f32 %v731, %v446
  %v735 = vadd.f32 %v732, %v451
  %vm736 = vcmask 130048
  %v737 = vsel %vm736, %v453, 0.0
  %738 = vadd.xlane.f32.xlu0 %v737
  %v739 = vpop.xlane.xlu0 %738
  %v740 = vsel %vm736, %v454, 0.0
  %741 = vadd.xlane.f32.xlu0 %v740
  %v742 = vpop.xlane.xlu0 %741
  %vm743 = vcmask 125952
  %v744 = vsel %vm743, %v455, 0.0
  %745 = vadd.xlane.f32.xlu0 %v744
  %v746 = vpop.xlane.xlu0 %745
  %v747 = vmul.f32 %v453, %v453
  %v748 = vmul.f32 %v454, %v454
  %v749 = vmul.f32 %v455, %v455
  %v750 = vsel %vm736, %v747, 0.0
  %751 = vadd.xlane.f32.xlu0 %v750
  %v752 = vpop.xlane.xlu0 %751
  %v753 = vsel %vm736, %v748, 0.0
  %754 = vadd.xlane.f32.xlu0 %v753
  %v755 = vpop.xlane.xlu0 %754
  %v756 = vsel %vm743, %v749, 0.0
  %757 = vadd.xlane.f32.xlu0 %v756
  %v758 = vpop.xlane.xlu0 %757
  %v759 = vsel %vm736, %v733, 0.0
  %760 = vadd.xlane.f32.xlu0 %v759
  %v761 = vpop.xlane.xlu0 %760
  %v762 = vsel %vm736, %v734, 0.0
  %763 = vadd.xlane.f32.xlu0 %v762
  %v764 = vpop.xlane.xlu0 %763
  %v765 = vsel %vm743, %v735, 0.0
  %766 = vadd.xlane.f32.xlu0 %v765
  %v767 = vpop.xlane.xlu0 %766
  %v768 = vmul.f32 %v733, %v733
  %v769 = vmul.f32 %v734, %v734
  %v770 = vmul.f32 %v735, %v735
  %v771 = vsel %vm736, %v768, 0.0
  %772 = vadd.xlane.f32.xlu0 %v771
  %v773 = vpop.xlane.xlu0 %772
  %v774 = vsel %vm736, %v769, 0.0
  %775 = vadd.xlane.f32.xlu0 %v774
  %v776 = vpop.xlane.xlu0 %775
  %v777 = vsel %vm743, %v770, 0.0
  %778 = vadd.xlane.f32.xlu0 %v777
  %v779 = vpop.xlane.xlu0 %778
  %v780 = vadd.f32 %v739, %v761
  %v781 = vadd.f32 %v742, %v764
  %v782 = vadd.f32 %v746, %v767
  %v783 = vadd.f32 %v752, %v773
  %v784 = vadd.f32 %v755, %v776
  %v785 = vadd.f32 %v758, %v779
  %v786 = vmul.f32 %v780, 0.03125
  %v787 = vmul.f32 %v781, 0.03125
  %v788 = vmul.f32 %v782, 0.03125
  %v789 = vmul.f32 %v783, 0.03125
  %v790 = vmul.f32 %v784, 0.03125
  %v791 = vmul.f32 %v785, 0.03125
  %v792 = vmul.f32 %v786, %v786
  %v793 = vmul.f32 %v787, %v787
  %v794 = vmul.f32 %v788, %v788
  %v795 = vsub.f32 %v789, %v792
  %v796 = vsub.f32 %v790, %v793
  %v797 = vsub.f32 %v791, %v794
  %v798 = vmax.f32 %v795, 0.0
  %v799 = vmax.f32 %v796, 0.0
  %v800 = vmax.f32 %v797, 0.0
  %v801 = vld [vmem:[%s3] sm:$0xff]
  %v802 = vld [vmem:[%s3 + $0x8] sm:$0xff]
  %v803 = vld [vmem:[%s3 + $0x10] sm:$0xf]
  %v804 = vadd.f32 %v798, 1e-05
  %v805 = vadd.f32 %v799, 1e-05
  %v806 = vadd.f32 %v800, 1e-05
  %v807 = vrsqrt.pop %v804
  %v808 = vrsqrt.pop %v805
  %v809 = vrsqrt.pop %v806
  %v810 = vmul.f32 %v801, %v807
  %v811 = vmul.f32 %v802, %v808
  %v812 = vmul.f32 %v803, %v809
  %814 = vset.pattern.permute.xlu0 0
  %815 = vperm.xlu0 %814, %v810
  %v816 = vpop.permute.xlu0 %815
  %819 = vset.pattern.permute.xlu0 0
  %820 = vperm.xlu0 %819, %v811
  %v821 = vpop.permute.xlu0 %820
  %824 = vset.pattern.permute.xlu0 0
  %825 = vperm.xlu0 %824, %v812
  %v826 = vpop.permute.xlu0 %825
  %v828 = vmul.f32 %v453, %v816
  %v829 = vmul.f32 %v454, %v821
  %v830 = vmul.f32 %v455, %v826
  %v831 = vld [vmem:[%s4] sm:$0xff]
  %v832 = vld [vmem:[%s4 + $0x8] sm:$0xff]
  %v833 = vld [vmem:[%s4 + $0x10] sm:$0xf]
  %v834 = vmul.f32 %v786, %v810
  %v835 = vmul.f32 %v787, %v811
  %v836 = vmul.f32 %v788, %v812
  %v837 = vsub.f32 %v831, %v834
  %v838 = vsub.f32 %v832, %v835
  %v839 = vsub.f32 %v833, %v836
  %841 = vset.pattern.permute.xlu0 0
  %842 = vperm.xlu0 %841, %v837
  %v843 = vpop.permute.xlu0 %842
  %846 = vset.pattern.permute.xlu0 0
  %847 = vperm.xlu0 %846, %v838
  %v848 = vpop.permute.xlu0 %847
  %851 = vset.pattern.permute.xlu0 0
  %852 = vperm.xlu0 %851, %v839
  %v853 = vpop.permute.xlu0 %852
  %v855 = vadd.f32 %v828, %v843
  %v856 = vadd.f32 %v829, %v848
  %v857 = vadd.f32 %v830, %v853
  %v858 = vmax.f32 %v855, 0.0
  %v859 = vmax.f32 %v856, 0.0
  %v860 = vmax.f32 %v857, 0.0
  %v861 = vmul.f32 %v733, %v816
  %v862 = vmul.f32 %v734, %v821
  %v863 = vmul.f32 %v735, %v826
  %v864 = vadd.f32 %v861, %v843
  %v865 = vadd.f32 %v862, %v848
  %v866 = vadd.f32 %v863, %v853
  %v867 = vmax.f32 %v864, 0.0
  %v868 = vmax.f32 %v865, 0.0
  %v869 = vmax.f32 %v866, 0.0
  %v870 = vpack.c.bf16 %v859, %v858
  %v871 = vpack.c.bf16 %v860, %v860
  %v872 = vld [vmem:[%s5] sm:$0xf]
  %v873 = vld [vmem:[%s5 + $0x4] sm:$0xf]
  %v874 = vld [vmem:[%s5 + $0x8] sm:$0x3]
  %877 = vrot.lane.b32.xlu0 %v870, 2
  %v878 = vpop.permute.xlu0 %877
  %879 = vrot.lane.b32.xlu0 %v871, 2
  %v880 = vpop.permute.xlu0 %879
  %v882 = vsel %vm65, 0, %v878
  %v885 = vsel %vm65, 0, %v880
  %s886 = scalar_lea.vmem %s5, 12
  %v887 = vld [vmem:[%s886] sm:$0xf]
  %v888 = vld [vmem:[%s886 + $0x4] sm:$0xf]
  %v889 = vld [vmem:[%s886 + $0x8] sm:$0x3]
  %890 = vrot.lane.b32.xlu0 %v870, 1
  %v891 = vpop.permute.xlu0 %890
  %892 = vrot.lane.b32.xlu0 %v871, 1
  %v893 = vpop.permute.xlu0 %892
  %v895 = vsel %vm75, 0, %v891
  %v898 = vsel %vm75, 0, %v893
  %v902 = vunpack.c.l.b16 %v887
  %v903 = vunpack.c.l.b16 %v888
  %v904 = vunpack.c.l.b16 %v889
  %v905 = vpack.c.b16 %v903, %v902
  %v906 = vpack.c.b16 %v904, %v904
  %vm907 = vcmask 162816
  %v909 = vsel %vm907, %v905, 0
  %v912 = vsel %vm907, %v906, 0
  %v914 = vsel %vm93, %v898, 0
  %916 = vmatprep.subr.bf16.mxu0 0
  %917 = vmatpush1.bf16.msra.mxu0 0
  %918 = vmatprep.subr.bf16.mxu0 0
  %919 = vmatpush1.bf16.msra.mxu0 0
  %920 = vmatprep.subr.bf16.mxu0 0
  %921 = vmatpush1.bf16.msra.mxu0 0
  %922 = vmatprep.subr.bf16.mxu0 0
  %923 = vmatpush1.bf16.msra.mxu0 0
  %924 = vmatprep.subr.bf16.mxu0 0
  %925 = vmatpush1.bf16.msra.mxu0 0
  %926 = vmatprep.subr.bf16.mxu0 0
  %927 = vmatpush1.bf16.msra.mxu0 0
  %928 = vmatprep.subr.bf16.mxu0 0
  %929 = vmatpush1.bf16.msra.mxu0 %v914
  %930 = vmatprep.subr.bf16.mxu0 0
  %931 = vmatpush1.bf16.msra.mxu0 %v895
  %932 = vmatprep.subr.bf16.mxu0 0
  %933 = vmatpush2.bf16.msra.mxu0 0
  %934 = vmatprep.subr.bf16.mxu0 0
  %935 = vmatpush2.bf16.msra.mxu0 0
  %936 = vmatprep.subr.bf16.mxu0 0
  %937 = vmatpush2.bf16.msra.mxu0 0
  %938 = vmatprep.subr.bf16.mxu0 0
  %939 = vmatpush2.bf16.msra.mxu0 0
  %940 = vmatprep.subr.bf16.mxu0 0
  %941 = vmatpush2.bf16.msra.mxu0 0
  %942 = vmatprep.subr.bf16.mxu0 0
  %943 = vmatpush2.bf16.msra.mxu0 0
  %944 = vmatprep.subr.bf16.mxu0 0
  %945 = vmatpush2.bf16.msra.mxu0 0
  %946 = vmatprep.subr.bf16.mxu0 0
  %947 = vmatpush2.bf16.msra.mxu0 0
  %948 = vmatprep.mubr.bf16.mxu0 0
  %949 = vmatmul.mubr.bf16.gmra.mxu0 %v909
  %v950 = vpop.f32.mrf.mxu0
  %v951 = vadd.f32 0.0, %v950
  %v952 = vpop.f32.mrf.mxu0
  %v953 = vpop.f32.mrf.mxu0
  %v954 = vadd.f32 0.0, %v953
  %v955 = vpop.f32.mrf.mxu0
  %956 = vmatprep.mubr.bf16.mxu0 0
  %957 = vmatmul.mubr.bf16.gmra.mxu0 %v912
  %v958 = vpop.f32.mrf.mxu0
  %v959 = vadd.f32 0.0, %v958
  %v960 = vpop.f32.mrf.mxu0
  %v961 = vpop.f32.mrf.mxu0
  %v962 = vpop.f32.mrf.mxu0
  %963 = vdwg.mxu0
  %v967 = vunpack.c.l.b16 %v872
  %v968 = vunpack.c.l.b16 %v873
  %v969 = vunpack.c.l.b16 %v874
  %v970 = vpack.c.b16 %v968, %v967
  %v971 = vpack.c.b16 %v969, %v969
  %v973 = vsel %vm907, %v970, 0
  %v976 = vsel %vm907, %v971, 0
  %v978 = vsel %vm93, %v885, 0
  %980 = vmatprep.subr.bf16.mxu0 0
  %981 = vmatpush1.bf16.msra.mxu0 0
  %982 = vmatprep.subr.bf16.mxu0 0
  %983 = vmatpush1.bf16.msra.mxu0 0
  %984 = vmatprep.subr.bf16.mxu0 0
  %985 = vmatpush1.bf16.msra.mxu0 0
  %986 = vmatprep.subr.bf16.mxu0 0
  %987 = vmatpush1.bf16.msra.mxu0 0
  %988 = vmatprep.subr.bf16.mxu0 0
  %989 = vmatpush1.bf16.msra.mxu0 0
  %990 = vmatprep.subr.bf16.mxu0 0
  %991 = vmatpush1.bf16.msra.mxu0 0
  %992 = vmatprep.subr.bf16.mxu0 0
  %993 = vmatpush1.bf16.msra.mxu0 %v978
  %994 = vmatprep.subr.bf16.mxu0 0
  %995 = vmatpush1.bf16.msra.mxu0 %v882
  %996 = vmatprep.subr.bf16.mxu0 0
  %997 = vmatpush2.bf16.msra.mxu0 0
  %998 = vmatprep.subr.bf16.mxu0 0
  %999 = vmatpush2.bf16.msra.mxu0 0
  %1000 = vmatprep.subr.bf16.mxu0 0
  %1001 = vmatpush2.bf16.msra.mxu0 0
  %1002 = vmatprep.subr.bf16.mxu0 0
  %1003 = vmatpush2.bf16.msra.mxu0 0
  %1004 = vmatprep.subr.bf16.mxu0 0
  %1005 = vmatpush2.bf16.msra.mxu0 0
  %1006 = vmatprep.subr.bf16.mxu0 0
  %1007 = vmatpush2.bf16.msra.mxu0 0
  %1008 = vmatprep.subr.bf16.mxu0 0
  %1009 = vmatpush2.bf16.msra.mxu0 0
  %1010 = vmatprep.subr.bf16.mxu0 0
  %1011 = vmatpush2.bf16.msra.mxu0 0
  %1012 = vmatprep.mubr.bf16.mxu0 0
  %1013 = vmatmul.mubr.bf16.gmra.mxu0 %v973
  %v1014 = vpop.f32.mrf.mxu0
  %v1015 = vadd.f32 %v951, %v1014
  %v1016 = vpop.f32.mrf.mxu0
  %v1017 = vpop.f32.mrf.mxu0
  %v1018 = vadd.f32 %v954, %v1017
  %v1019 = vpop.f32.mrf.mxu0
  %1020 = vmatprep.mubr.bf16.mxu0 0
  %1021 = vmatmul.mubr.bf16.gmra.mxu0 %v976
  %v1022 = vpop.f32.mrf.mxu0
  %v1023 = vadd.f32 %v959, %v1022
  %v1024 = vpop.f32.mrf.mxu0
  %v1025 = vpop.f32.mrf.mxu0
  %v1026 = vpop.f32.mrf.mxu0
  %1027 = vdwg.mxu0
  %s1028 = scalar_lea.vmem %s5, 24
  %v1029 = vld [vmem:[%s1028] sm:$0xf]
  %v1030 = vld [vmem:[%s1028 + $0x4] sm:$0xf]
  %v1031 = vld [vmem:[%s1028 + $0x8] sm:$0x3]
  %v1035 = vunpack.c.l.b16 %v1029
  %v1036 = vunpack.c.l.b16 %v1030
  %v1037 = vunpack.c.l.b16 %v1031
  %v1038 = vpack.c.b16 %v1036, %v1035
  %v1039 = vpack.c.b16 %v1037, %v1037
  %v1041 = vsel %vm907, %v1038, 0
  %v1044 = vsel %vm907, %v1039, 0
  %v1047 = vsel %vm93, %v871, 0
  %1049 = vmatprep.subr.bf16.mxu0 0
  %1050 = vmatpush1.bf16.msra.mxu0 0
  %1051 = vmatprep.subr.bf16.mxu0 0
  %1052 = vmatpush1.bf16.msra.mxu0 0
  %1053 = vmatprep.subr.bf16.mxu0 0
  %1054 = vmatpush1.bf16.msra.mxu0 0
  %1055 = vmatprep.subr.bf16.mxu0 0
  %1056 = vmatpush1.bf16.msra.mxu0 0
  %1057 = vmatprep.subr.bf16.mxu0 0
  %1058 = vmatpush1.bf16.msra.mxu0 0
  %1059 = vmatprep.subr.bf16.mxu0 0
  %1060 = vmatpush1.bf16.msra.mxu0 0
  %1061 = vmatprep.subr.bf16.mxu0 0
  %1062 = vmatpush1.bf16.msra.mxu0 %v1047
  %1063 = vmatprep.subr.bf16.mxu0 0
  %1064 = vmatpush1.bf16.msra.mxu0 %v870
  %1065 = vmatprep.subr.bf16.mxu0 0
  %1066 = vmatpush2.bf16.msra.mxu0 0
  %1067 = vmatprep.subr.bf16.mxu0 0
  %1068 = vmatpush2.bf16.msra.mxu0 0
  %1069 = vmatprep.subr.bf16.mxu0 0
  %1070 = vmatpush2.bf16.msra.mxu0 0
  %1071 = vmatprep.subr.bf16.mxu0 0
  %1072 = vmatpush2.bf16.msra.mxu0 0
  %1073 = vmatprep.subr.bf16.mxu0 0
  %1074 = vmatpush2.bf16.msra.mxu0 0
  %1075 = vmatprep.subr.bf16.mxu0 0
  %1076 = vmatpush2.bf16.msra.mxu0 0
  %1077 = vmatprep.subr.bf16.mxu0 0
  %1078 = vmatpush2.bf16.msra.mxu0 0
  %1079 = vmatprep.subr.bf16.mxu0 0
  %1080 = vmatpush2.bf16.msra.mxu0 0
  %1081 = vmatprep.mubr.bf16.mxu0 0
  %1082 = vmatmul.mubr.bf16.gmra.mxu0 %v1041
  %v1083 = vpop.f32.mrf.mxu0
  %v1084 = vadd.f32 0.0, %v1083
  %v1085 = vpop.f32.mrf.mxu0
  %v1086 = vpop.f32.mrf.mxu0
  %v1087 = vadd.f32 0.0, %v1086
  %v1088 = vpop.f32.mrf.mxu0
  %1089 = vmatprep.mubr.bf16.mxu0 0
  %1090 = vmatmul.mubr.bf16.gmra.mxu0 %v1044
  %v1091 = vpop.f32.mrf.mxu0
  %v1092 = vadd.f32 0.0, %v1091
  %v1093 = vpop.f32.mrf.mxu0
  %v1094 = vpop.f32.mrf.mxu0
  %v1095 = vpop.f32.mrf.mxu0
  %1096 = vdwg.mxu0
  %v1097 = vadd.f32 %v1015, %v1084
  %v1098 = vadd.f32 %v1018, %v1087
  %v1099 = vadd.f32 %v1023, %v1092
  %s1100 = scalar_lea.vmem %s5, 36
  %v1101 = vld [vmem:[%s1100] sm:$0xf]
  %v1102 = vld [vmem:[%s1100 + $0x4] sm:$0xf]
  %v1103 = vld [vmem:[%s1100 + $0x8] sm:$0x3]
  %1104 = vrot.lane.b32.xlu0 %v870, 127
  %v1105 = vpop.permute.xlu0 %1104
  %1106 = vrot.lane.b32.xlu0 %v871, 127
  %v1107 = vpop.permute.xlu0 %1106
  %v1109 = vsel %vm289, %v1105, 0
  %v1112 = vsel %vm289, %v1107, 0
  %v1116 = vunpack.c.l.b16 %v1101
  %v1117 = vunpack.c.l.b16 %v1102
  %v1118 = vunpack.c.l.b16 %v1103
  %v1119 = vpack.c.b16 %v1117, %v1116
  %v1120 = vpack.c.b16 %v1118, %v1118
  %v1122 = vsel %vm907, %v1119, 0
  %v1125 = vsel %vm907, %v1120, 0
  %v1127 = vsel %vm93, %v1112, 0
  %1129 = vmatprep.subr.bf16.mxu0 0
  %1130 = vmatpush1.bf16.msra.mxu0 0
  %1131 = vmatprep.subr.bf16.mxu0 0
  %1132 = vmatpush1.bf16.msra.mxu0 0
  %1133 = vmatprep.subr.bf16.mxu0 0
  %1134 = vmatpush1.bf16.msra.mxu0 0
  %1135 = vmatprep.subr.bf16.mxu0 0
  %1136 = vmatpush1.bf16.msra.mxu0 0
  %1137 = vmatprep.subr.bf16.mxu0 0
  %1138 = vmatpush1.bf16.msra.mxu0 0
  %1139 = vmatprep.subr.bf16.mxu0 0
  %1140 = vmatpush1.bf16.msra.mxu0 0
  %1141 = vmatprep.subr.bf16.mxu0 0
  %1142 = vmatpush1.bf16.msra.mxu0 %v1127
  %1143 = vmatprep.subr.bf16.mxu0 0
  %1144 = vmatpush1.bf16.msra.mxu0 %v1109
  %1145 = vmatprep.subr.bf16.mxu0 0
  %1146 = vmatpush2.bf16.msra.mxu0 0
  %1147 = vmatprep.subr.bf16.mxu0 0
  %1148 = vmatpush2.bf16.msra.mxu0 0
  %1149 = vmatprep.subr.bf16.mxu0 0
  %1150 = vmatpush2.bf16.msra.mxu0 0
  %1151 = vmatprep.subr.bf16.mxu0 0
  %1152 = vmatpush2.bf16.msra.mxu0 0
  %1153 = vmatprep.subr.bf16.mxu0 0
  %1154 = vmatpush2.bf16.msra.mxu0 0
  %1155 = vmatprep.subr.bf16.mxu0 0
  %1156 = vmatpush2.bf16.msra.mxu0 0
  %1157 = vmatprep.subr.bf16.mxu0 0
  %1158 = vmatpush2.bf16.msra.mxu0 0
  %1159 = vmatprep.subr.bf16.mxu0 0
  %1160 = vmatpush2.bf16.msra.mxu0 0
  %1161 = vmatprep.mubr.bf16.mxu0 0
  %1162 = vmatmul.mubr.bf16.gmra.mxu0 %v1122
  %v1163 = vpop.f32.mrf.mxu0
  %v1164 = vadd.f32 0.0, %v1163
  %v1165 = vpop.f32.mrf.mxu0
  %v1166 = vpop.f32.mrf.mxu0
  %v1167 = vadd.f32 0.0, %v1166
  %v1168 = vpop.f32.mrf.mxu0
  %1169 = vmatprep.mubr.bf16.mxu0 0
  %1170 = vmatmul.mubr.bf16.gmra.mxu0 %v1125
  %v1171 = vpop.f32.mrf.mxu0
  %v1172 = vadd.f32 0.0, %v1171
  %v1173 = vpop.f32.mrf.mxu0
  %v1174 = vpop.f32.mrf.mxu0
  %v1175 = vpop.f32.mrf.mxu0
  %1176 = vdwg.mxu0
  %v1177 = vadd.f32 %v1097, %v1164
  %v1178 = vadd.f32 %v1098, %v1167
  %v1179 = vadd.f32 %v1099, %v1172
  %s1180 = scalar_lea.vmem %s5, 48
  %v1181 = vld [vmem:[%s1180] sm:$0xf]
  %v1182 = vld [vmem:[%s1180 + $0x4] sm:$0xf]
  %v1183 = vld [vmem:[%s1180 + $0x8] sm:$0x3]
  %1184 = vrot.lane.b32.xlu0 %v870, 126
  %v1185 = vpop.permute.xlu0 %1184
  %1186 = vrot.lane.b32.xlu0 %v871, 126
  %v1187 = vpop.permute.xlu0 %1186
  %v1189 = vsel %vm365, %v1185, 0
  %v1192 = vsel %vm365, %v1187, 0
  %v1196 = vunpack.c.l.b16 %v1181
  %v1197 = vunpack.c.l.b16 %v1182
  %v1198 = vunpack.c.l.b16 %v1183
  %v1199 = vpack.c.b16 %v1197, %v1196
  %v1200 = vpack.c.b16 %v1198, %v1198
  %v1202 = vsel %vm907, %v1199, 0
  %v1205 = vsel %vm907, %v1200, 0
  %v1207 = vsel %vm93, %v1192, 0
  %1209 = vmatprep.subr.bf16.mxu0 0
  %1210 = vmatpush1.bf16.msra.mxu0 0
  %1211 = vmatprep.subr.bf16.mxu0 0
  %1212 = vmatpush1.bf16.msra.mxu0 0
  %1213 = vmatprep.subr.bf16.mxu0 0
  %1214 = vmatpush1.bf16.msra.mxu0 0
  %1215 = vmatprep.subr.bf16.mxu0 0
  %1216 = vmatpush1.bf16.msra.mxu0 0
  %1217 = vmatprep.subr.bf16.mxu0 0
  %1218 = vmatpush1.bf16.msra.mxu0 0
  %1219 = vmatprep.subr.bf16.mxu0 0
  %1220 = vmatpush1.bf16.msra.mxu0 0
  %1221 = vmatprep.subr.bf16.mxu0 0
  %1222 = vmatpush1.bf16.msra.mxu0 %v1207
  %1223 = vmatprep.subr.bf16.mxu0 0
  %1224 = vmatpush1.bf16.msra.mxu0 %v1189
  %1225 = vmatprep.subr.bf16.mxu0 0
  %1226 = vmatpush2.bf16.msra.mxu0 0
  %1227 = vmatprep.subr.bf16.mxu0 0
  %1228 = vmatpush2.bf16.msra.mxu0 0
  %1229 = vmatprep.subr.bf16.mxu0 0
  %1230 = vmatpush2.bf16.msra.mxu0 0
  %1231 = vmatprep.subr.bf16.mxu0 0
  %1232 = vmatpush2.bf16.msra.mxu0 0
  %1233 = vmatprep.subr.bf16.mxu0 0
  %1234 = vmatpush2.bf16.msra.mxu0 0
  %1235 = vmatprep.subr.bf16.mxu0 0
  %1236 = vmatpush2.bf16.msra.mxu0 0
  %1237 = vmatprep.subr.bf16.mxu0 0
  %1238 = vmatpush2.bf16.msra.mxu0 0
  %1239 = vmatprep.subr.bf16.mxu0 0
  %1240 = vmatpush2.bf16.msra.mxu0 0
  %1241 = vmatprep.mubr.bf16.mxu0 0
  %1242 = vmatmul.mubr.bf16.gmra.mxu0 %v1202
  %v1243 = vpop.f32.mrf.mxu0
  %v1244 = vadd.f32 0.0, %v1243
  %v1245 = vpop.f32.mrf.mxu0
  %v1246 = vpop.f32.mrf.mxu0
  %v1247 = vadd.f32 0.0, %v1246
  %v1248 = vpop.f32.mrf.mxu0
  %1249 = vmatprep.mubr.bf16.mxu0 0
  %1250 = vmatmul.mubr.bf16.gmra.mxu0 %v1205
  %v1251 = vpop.f32.mrf.mxu0
  %v1252 = vadd.f32 0.0, %v1251
  %v1253 = vpop.f32.mrf.mxu0
  %v1254 = vpop.f32.mrf.mxu0
  %v1255 = vpop.f32.mrf.mxu0
  %1256 = vdwg.mxu0
  %v1257 = vadd.f32 %v1177, %v1244
  %v1258 = vadd.f32 %v1178, %v1247
  %v1259 = vadd.f32 %v1179, %v1252
  %v1260 = vld [vmem:[%s6] sm:$0xff]
  %v1261 = vld [vmem:[%s6 + $0x8] sm:$0xff]
  %v1262 = vld [vmem:[%s6 + $0x10] sm:$0xf]
  %1264 = vset.pattern.permute.xlu0 0
  %1265 = vperm.xlu0 %1264, %v1260
  %v1266 = vpop.permute.xlu0 %1265
  %1269 = vset.pattern.permute.xlu0 0
  %1270 = vperm.xlu0 %1269, %v1261
  %v1271 = vpop.permute.xlu0 %1270
  %1274 = vset.pattern.permute.xlu0 0
  %1275 = vperm.xlu0 %1274, %v1262
  %v1276 = vpop.permute.xlu0 %1275
  %v1278 = vadd.f32 %v1257, %v1266
  %v1279 = vadd.f32 %v1258, %v1271
  %v1280 = vadd.f32 %v1259, %v1276
  %v1281 = vpack.c.bf16 %v868, %v867
  %v1282 = vpack.c.bf16 %v869, %v869
  %1285 = vrot.lane.b32.xlu0 %v1281, 2
  %v1286 = vpop.permute.xlu0 %1285
  %1287 = vrot.lane.b32.xlu0 %v1282, 2
  %v1288 = vpop.permute.xlu0 %1287
  %v1290 = vsel %vm65, 0, %v1286
  %v1293 = vsel %vm65, 0, %v1288
  %1294 = vrot.lane.b32.xlu0 %v1281, 1
  %v1295 = vpop.permute.xlu0 %1294
  %1296 = vrot.lane.b32.xlu0 %v1282, 1
  %v1297 = vpop.permute.xlu0 %1296
  %v1299 = vsel %vm75, 0, %v1295
  %v1302 = vsel %vm75, 0, %v1297
  %v1303 = vsel %vm93, %v1302, 0
  %1305 = vmatprep.subr.bf16.mxu0 0
  %1306 = vmatpush1.bf16.msra.mxu0 0
  %1307 = vmatprep.subr.bf16.mxu0 0
  %1308 = vmatpush1.bf16.msra.mxu0 0
  %1309 = vmatprep.subr.bf16.mxu0 0
  %1310 = vmatpush1.bf16.msra.mxu0 0
  %1311 = vmatprep.subr.bf16.mxu0 0
  %1312 = vmatpush1.bf16.msra.mxu0 0
  %1313 = vmatprep.subr.bf16.mxu0 0
  %1314 = vmatpush1.bf16.msra.mxu0 0
  %1315 = vmatprep.subr.bf16.mxu0 0
  %1316 = vmatpush1.bf16.msra.mxu0 0
  %1317 = vmatprep.subr.bf16.mxu0 0
  %1318 = vmatpush1.bf16.msra.mxu0 %v1303
  %1319 = vmatprep.subr.bf16.mxu0 0
  %1320 = vmatpush1.bf16.msra.mxu0 %v1299
  %1321 = vmatprep.subr.bf16.mxu0 0
  %1322 = vmatpush2.bf16.msra.mxu0 0
  %1323 = vmatprep.subr.bf16.mxu0 0
  %1324 = vmatpush2.bf16.msra.mxu0 0
  %1325 = vmatprep.subr.bf16.mxu0 0
  %1326 = vmatpush2.bf16.msra.mxu0 0
  %1327 = vmatprep.subr.bf16.mxu0 0
  %1328 = vmatpush2.bf16.msra.mxu0 0
  %1329 = vmatprep.subr.bf16.mxu0 0
  %1330 = vmatpush2.bf16.msra.mxu0 0
  %1331 = vmatprep.subr.bf16.mxu0 0
  %1332 = vmatpush2.bf16.msra.mxu0 0
  %1333 = vmatprep.subr.bf16.mxu0 0
  %1334 = vmatpush2.bf16.msra.mxu0 0
  %1335 = vmatprep.subr.bf16.mxu0 0
  %1336 = vmatpush2.bf16.msra.mxu0 0
  %1337 = vmatprep.mubr.bf16.mxu0 0
  %1338 = vmatmul.mubr.bf16.gmra.mxu0 %v909
  %v1339 = vpop.f32.mrf.mxu0
  %v1340 = vadd.f32 0.0, %v1339
  %v1341 = vpop.f32.mrf.mxu0
  %v1342 = vpop.f32.mrf.mxu0
  %v1343 = vadd.f32 0.0, %v1342
  %v1344 = vpop.f32.mrf.mxu0
  %1345 = vmatprep.mubr.bf16.mxu0 0
  %1346 = vmatmul.mubr.bf16.gmra.mxu0 %v912
  %v1347 = vpop.f32.mrf.mxu0
  %v1348 = vadd.f32 0.0, %v1347
  %v1349 = vpop.f32.mrf.mxu0
  %v1350 = vpop.f32.mrf.mxu0
  %v1351 = vpop.f32.mrf.mxu0
  %1352 = vdwg.mxu0
  %v1353 = vsel %vm93, %v1293, 0
  %1355 = vmatprep.subr.bf16.mxu0 0
  %1356 = vmatpush1.bf16.msra.mxu0 0
  %1357 = vmatprep.subr.bf16.mxu0 0
  %1358 = vmatpush1.bf16.msra.mxu0 0
  %1359 = vmatprep.subr.bf16.mxu0 0
  %1360 = vmatpush1.bf16.msra.mxu0 0
  %1361 = vmatprep.subr.bf16.mxu0 0
  %1362 = vmatpush1.bf16.msra.mxu0 0
  %1363 = vmatprep.subr.bf16.mxu0 0
  %1364 = vmatpush1.bf16.msra.mxu0 0
  %1365 = vmatprep.subr.bf16.mxu0 0
  %1366 = vmatpush1.bf16.msra.mxu0 0
  %1367 = vmatprep.subr.bf16.mxu0 0
  %1368 = vmatpush1.bf16.msra.mxu0 %v1353
  %1369 = vmatprep.subr.bf16.mxu0 0
  %1370 = vmatpush1.bf16.msra.mxu0 %v1290
  %1371 = vmatprep.subr.bf16.mxu0 0
  %1372 = vmatpush2.bf16.msra.mxu0 0
  %1373 = vmatprep.subr.bf16.mxu0 0
  %1374 = vmatpush2.bf16.msra.mxu0 0
  %1375 = vmatprep.subr.bf16.mxu0 0
  %1376 = vmatpush2.bf16.msra.mxu0 0
  %1377 = vmatprep.subr.bf16.mxu0 0
  %1378 = vmatpush2.bf16.msra.mxu0 0
  %1379 = vmatprep.subr.bf16.mxu0 0
  %1380 = vmatpush2.bf16.msra.mxu0 0
  %1381 = vmatprep.subr.bf16.mxu0 0
  %1382 = vmatpush2.bf16.msra.mxu0 0
  %1383 = vmatprep.subr.bf16.mxu0 0
  %1384 = vmatpush2.bf16.msra.mxu0 0
  %1385 = vmatprep.subr.bf16.mxu0 0
  %1386 = vmatpush2.bf16.msra.mxu0 0
  %1387 = vmatprep.mubr.bf16.mxu0 0
  %1388 = vmatmul.mubr.bf16.gmra.mxu0 %v973
  %v1389 = vpop.f32.mrf.mxu0
  %v1390 = vadd.f32 %v1340, %v1389
  %v1391 = vpop.f32.mrf.mxu0
  %v1392 = vpop.f32.mrf.mxu0
  %v1393 = vadd.f32 %v1343, %v1392
  %v1394 = vpop.f32.mrf.mxu0
  %1395 = vmatprep.mubr.bf16.mxu0 0
  %1396 = vmatmul.mubr.bf16.gmra.mxu0 %v976
  %v1397 = vpop.f32.mrf.mxu0
  %v1398 = vadd.f32 %v1348, %v1397
  %v1399 = vpop.f32.mrf.mxu0
  %v1400 = vpop.f32.mrf.mxu0
  %v1401 = vpop.f32.mrf.mxu0
  %1402 = vdwg.mxu0
  %v1404 = vsel %vm93, %v1282, 0
  %1406 = vmatprep.subr.bf16.mxu0 0
  %1407 = vmatpush1.bf16.msra.mxu0 0
  %1408 = vmatprep.subr.bf16.mxu0 0
  %1409 = vmatpush1.bf16.msra.mxu0 0
  %1410 = vmatprep.subr.bf16.mxu0 0
  %1411 = vmatpush1.bf16.msra.mxu0 0
  %1412 = vmatprep.subr.bf16.mxu0 0
  %1413 = vmatpush1.bf16.msra.mxu0 0
  %1414 = vmatprep.subr.bf16.mxu0 0
  %1415 = vmatpush1.bf16.msra.mxu0 0
  %1416 = vmatprep.subr.bf16.mxu0 0
  %1417 = vmatpush1.bf16.msra.mxu0 0
  %1418 = vmatprep.subr.bf16.mxu0 0
  %1419 = vmatpush1.bf16.msra.mxu0 %v1404
  %1420 = vmatprep.subr.bf16.mxu0 0
  %1421 = vmatpush1.bf16.msra.mxu0 %v1281
  %1422 = vmatprep.subr.bf16.mxu0 0
  %1423 = vmatpush2.bf16.msra.mxu0 0
  %1424 = vmatprep.subr.bf16.mxu0 0
  %1425 = vmatpush2.bf16.msra.mxu0 0
  %1426 = vmatprep.subr.bf16.mxu0 0
  %1427 = vmatpush2.bf16.msra.mxu0 0
  %1428 = vmatprep.subr.bf16.mxu0 0
  %1429 = vmatpush2.bf16.msra.mxu0 0
  %1430 = vmatprep.subr.bf16.mxu0 0
  %1431 = vmatpush2.bf16.msra.mxu0 0
  %1432 = vmatprep.subr.bf16.mxu0 0
  %1433 = vmatpush2.bf16.msra.mxu0 0
  %1434 = vmatprep.subr.bf16.mxu0 0
  %1435 = vmatpush2.bf16.msra.mxu0 0
  %1436 = vmatprep.subr.bf16.mxu0 0
  %1437 = vmatpush2.bf16.msra.mxu0 0
  %1438 = vmatprep.mubr.bf16.mxu0 0
  %1439 = vmatmul.mubr.bf16.gmra.mxu0 %v1041
  %v1440 = vpop.f32.mrf.mxu0
  %v1441 = vadd.f32 0.0, %v1440
  %v1442 = vpop.f32.mrf.mxu0
  %v1443 = vpop.f32.mrf.mxu0
  %v1444 = vadd.f32 0.0, %v1443
  %v1445 = vpop.f32.mrf.mxu0
  %1446 = vmatprep.mubr.bf16.mxu0 0
  %1447 = vmatmul.mubr.bf16.gmra.mxu0 %v1044
  %v1448 = vpop.f32.mrf.mxu0
  %v1449 = vadd.f32 0.0, %v1448
  %v1450 = vpop.f32.mrf.mxu0
  %v1451 = vpop.f32.mrf.mxu0
  %v1452 = vpop.f32.mrf.mxu0
  %1453 = vdwg.mxu0
  %v1454 = vadd.f32 %v1390, %v1441
  %v1455 = vadd.f32 %v1393, %v1444
  %v1456 = vadd.f32 %v1398, %v1449
  %1457 = vrot.lane.b32.xlu0 %v1281, 127
  %v1458 = vpop.permute.xlu0 %1457
  %1459 = vrot.lane.b32.xlu0 %v1282, 127
  %v1460 = vpop.permute.xlu0 %1459
  %v1462 = vsel %vm289, %v1458, 0
  %v1465 = vsel %vm289, %v1460, 0
  %v1466 = vsel %vm93, %v1465, 0
  %1468 = vmatprep.subr.bf16.mxu0 0
  %1469 = vmatpush1.bf16.msra.mxu0 0
  %1470 = vmatprep.subr.bf16.mxu0 0
  %1471 = vmatpush1.bf16.msra.mxu0 0
  %1472 = vmatprep.subr.bf16.mxu0 0
  %1473 = vmatpush1.bf16.msra.mxu0 0
  %1474 = vmatprep.subr.bf16.mxu0 0
  %1475 = vmatpush1.bf16.msra.mxu0 0
  %1476 = vmatprep.subr.bf16.mxu0 0
  %1477 = vmatpush1.bf16.msra.mxu0 0
  %1478 = vmatprep.subr.bf16.mxu0 0
  %1479 = vmatpush1.bf16.msra.mxu0 0
  %1480 = vmatprep.subr.bf16.mxu0 0
  %1481 = vmatpush1.bf16.msra.mxu0 %v1466
  %1482 = vmatprep.subr.bf16.mxu0 0
  %1483 = vmatpush1.bf16.msra.mxu0 %v1462
  %1484 = vmatprep.subr.bf16.mxu0 0
  %1485 = vmatpush2.bf16.msra.mxu0 0
  %1486 = vmatprep.subr.bf16.mxu0 0
  %1487 = vmatpush2.bf16.msra.mxu0 0
  %1488 = vmatprep.subr.bf16.mxu0 0
  %1489 = vmatpush2.bf16.msra.mxu0 0
  %1490 = vmatprep.subr.bf16.mxu0 0
  %1491 = vmatpush2.bf16.msra.mxu0 0
  %1492 = vmatprep.subr.bf16.mxu0 0
  %1493 = vmatpush2.bf16.msra.mxu0 0
  %1494 = vmatprep.subr.bf16.mxu0 0
  %1495 = vmatpush2.bf16.msra.mxu0 0
  %1496 = vmatprep.subr.bf16.mxu0 0
  %1497 = vmatpush2.bf16.msra.mxu0 0
  %1498 = vmatprep.subr.bf16.mxu0 0
  %1499 = vmatpush2.bf16.msra.mxu0 0
  %1500 = vmatprep.mubr.bf16.mxu0 0
  %1501 = vmatmul.mubr.bf16.gmra.mxu0 %v1122
  %v1502 = vpop.f32.mrf.mxu0
  %v1503 = vadd.f32 0.0, %v1502
  %v1504 = vpop.f32.mrf.mxu0
  %v1505 = vpop.f32.mrf.mxu0
  %v1506 = vadd.f32 0.0, %v1505
  %v1507 = vpop.f32.mrf.mxu0
  %1508 = vmatprep.mubr.bf16.mxu0 0
  %1509 = vmatmul.mubr.bf16.gmra.mxu0 %v1125
  %v1510 = vpop.f32.mrf.mxu0
  %v1511 = vadd.f32 0.0, %v1510
  %v1512 = vpop.f32.mrf.mxu0
  %v1513 = vpop.f32.mrf.mxu0
  %v1514 = vpop.f32.mrf.mxu0
  %1515 = vdwg.mxu0
  %v1516 = vadd.f32 %v1454, %v1503
  %v1517 = vadd.f32 %v1455, %v1506
  %v1518 = vadd.f32 %v1456, %v1511
  %1519 = vrot.lane.b32.xlu0 %v1281, 126
  %v1520 = vpop.permute.xlu0 %1519
  %1521 = vrot.lane.b32.xlu0 %v1282, 126
  %v1522 = vpop.permute.xlu0 %1521
  %v1524 = vsel %vm365, %v1520, 0
  %v1527 = vsel %vm365, %v1522, 0
  %v1528 = vsel %vm93, %v1527, 0
  %1530 = vmatprep.subr.bf16.mxu0 0
  %1531 = vmatpush1.bf16.msra.mxu0 0
  %1532 = vmatprep.subr.bf16.mxu0 0
  %1533 = vmatpush1.bf16.msra.mxu0 0
  %1534 = vmatprep.subr.bf16.mxu0 0
  %1535 = vmatpush1.bf16.msra.mxu0 0
  %1536 = vmatprep.subr.bf16.mxu0 0
  %1537 = vmatpush1.bf16.msra.mxu0 0
  %1538 = vmatprep.subr.bf16.mxu0 0
  %1539 = vmatpush1.bf16.msra.mxu0 0
  %1540 = vmatprep.subr.bf16.mxu0 0
  %1541 = vmatpush1.bf16.msra.mxu0 0
  %1542 = vmatprep.subr.bf16.mxu0 0
  %1543 = vmatpush1.bf16.msra.mxu0 %v1528
  %1544 = vmatprep.subr.bf16.mxu0 0
  %1545 = vmatpush1.bf16.msra.mxu0 %v1524
  %1546 = vmatprep.subr.bf16.mxu0 0
  %1547 = vmatpush2.bf16.msra.mxu0 0
  %1548 = vmatprep.subr.bf16.mxu0 0
  %1549 = vmatpush2.bf16.msra.mxu0 0
  %1550 = vmatprep.subr.bf16.mxu0 0
  %1551 = vmatpush2.bf16.msra.mxu0 0
  %1552 = vmatprep.subr.bf16.mxu0 0
  %1553 = vmatpush2.bf16.msra.mxu0 0
  %1554 = vmatprep.subr.bf16.mxu0 0
  %1555 = vmatpush2.bf16.msra.mxu0 0
  %1556 = vmatprep.subr.bf16.mxu0 0
  %1557 = vmatpush2.bf16.msra.mxu0 0
  %1558 = vmatprep.subr.bf16.mxu0 0
  %1559 = vmatpush2.bf16.msra.mxu0 0
  %1560 = vmatprep.subr.bf16.mxu0 0
  %1561 = vmatpush2.bf16.msra.mxu0 0
  %1562 = vmatprep.mubr.bf16.mxu0 0
  %1563 = vmatmul.mubr.bf16.gmra.mxu0 %v1202
  %v1564 = vpop.f32.mrf.mxu0
  %v1565 = vadd.f32 0.0, %v1564
  %v1566 = vpop.f32.mrf.mxu0
  %v1567 = vpop.f32.mrf.mxu0
  %v1568 = vadd.f32 0.0, %v1567
  %v1569 = vpop.f32.mrf.mxu0
  %1570 = vmatprep.mubr.bf16.mxu0 0
  %1571 = vmatmul.mubr.bf16.gmra.mxu0 %v1205
  %v1572 = vpop.f32.mrf.mxu0
  %v1573 = vadd.f32 0.0, %v1572
  %v1574 = vpop.f32.mrf.mxu0
  %v1575 = vpop.f32.mrf.mxu0
  %v1576 = vpop.f32.mrf.mxu0
  %1577 = vdwg.mxu0
  %v1578 = vadd.f32 %v1516, %v1565
  %v1579 = vadd.f32 %v1517, %v1568
  %v1580 = vadd.f32 %v1518, %v1573
  %v1581 = vadd.f32 %v1578, %v1266
  %v1582 = vadd.f32 %v1579, %v1271
  %v1583 = vadd.f32 %v1580, %v1276
  %v1584 = vsel %vm736, %v1278, 0.0
  %1585 = vadd.xlane.f32.xlu0 %v1584
  %v1586 = vpop.xlane.xlu0 %1585
  %v1587 = vsel %vm736, %v1279, 0.0
  %1588 = vadd.xlane.f32.xlu0 %v1587
  %v1589 = vpop.xlane.xlu0 %1588
  %v1590 = vsel %vm743, %v1280, 0.0
  %1591 = vadd.xlane.f32.xlu0 %v1590
  %v1592 = vpop.xlane.xlu0 %1591
  %v1593 = vmul.f32 %v1278, %v1278
  %v1594 = vmul.f32 %v1279, %v1279
  %v1595 = vmul.f32 %v1280, %v1280
  %v1596 = vsel %vm736, %v1593, 0.0
  %1597 = vadd.xlane.f32.xlu0 %v1596
  %v1598 = vpop.xlane.xlu0 %1597
  %v1599 = vsel %vm736, %v1594, 0.0
  %1600 = vadd.xlane.f32.xlu0 %v1599
  %v1601 = vpop.xlane.xlu0 %1600
  %v1602 = vsel %vm743, %v1595, 0.0
  %1603 = vadd.xlane.f32.xlu0 %v1602
  %v1604 = vpop.xlane.xlu0 %1603
  %v1605 = vsel %vm736, %v1581, 0.0
  %1606 = vadd.xlane.f32.xlu0 %v1605
  %v1607 = vpop.xlane.xlu0 %1606
  %v1608 = vsel %vm736, %v1582, 0.0
  %1609 = vadd.xlane.f32.xlu0 %v1608
  %v1610 = vpop.xlane.xlu0 %1609
  %v1611 = vsel %vm743, %v1583, 0.0
  %1612 = vadd.xlane.f32.xlu0 %v1611
  %v1613 = vpop.xlane.xlu0 %1612
  %v1614 = vmul.f32 %v1581, %v1581
  %v1615 = vmul.f32 %v1582, %v1582
  %v1616 = vmul.f32 %v1583, %v1583
  %v1617 = vsel %vm736, %v1614, 0.0
  %1618 = vadd.xlane.f32.xlu0 %v1617
  %v1619 = vpop.xlane.xlu0 %1618
  %v1620 = vsel %vm736, %v1615, 0.0
  %1621 = vadd.xlane.f32.xlu0 %v1620
  %v1622 = vpop.xlane.xlu0 %1621
  %v1623 = vsel %vm743, %v1616, 0.0
  %1624 = vadd.xlane.f32.xlu0 %v1623
  %v1625 = vpop.xlane.xlu0 %1624
  %v1626 = vadd.f32 %v1586, %v1607
  %v1627 = vadd.f32 %v1589, %v1610
  %v1628 = vadd.f32 %v1592, %v1613
  %v1629 = vadd.f32 %v1598, %v1619
  %v1630 = vadd.f32 %v1601, %v1622
  %v1631 = vadd.f32 %v1604, %v1625
  %v1632 = vmul.f32 %v1626, 0.03125
  %v1633 = vmul.f32 %v1627, 0.03125
  %v1634 = vmul.f32 %v1628, 0.03125
  %v1635 = vmul.f32 %v1629, 0.03125
  %v1636 = vmul.f32 %v1630, 0.03125
  %v1637 = vmul.f32 %v1631, 0.03125
  %v1638 = vmul.f32 %v1632, %v1632
  %v1639 = vmul.f32 %v1633, %v1633
  %v1640 = vmul.f32 %v1634, %v1634
  %v1641 = vsub.f32 %v1635, %v1638
  %v1642 = vsub.f32 %v1636, %v1639
  %v1643 = vsub.f32 %v1637, %v1640
  %v1644 = vmax.f32 %v1641, 0.0
  %v1645 = vmax.f32 %v1642, 0.0
  %v1646 = vmax.f32 %v1643, 0.0
  %v1647 = vld [vmem:[%s7] sm:$0xff]
  %v1648 = vld [vmem:[%s7 + $0x8] sm:$0xff]
  %v1649 = vld [vmem:[%s7 + $0x10] sm:$0xf]
  %v1650 = vadd.f32 %v1644, 1e-05
  %v1651 = vadd.f32 %v1645, 1e-05
  %v1652 = vadd.f32 %v1646, 1e-05
  %v1653 = vrsqrt.pop %v1650
  %v1654 = vrsqrt.pop %v1651
  %v1655 = vrsqrt.pop %v1652
  %v1656 = vmul.f32 %v1647, %v1653
  %v1657 = vmul.f32 %v1648, %v1654
  %v1658 = vmul.f32 %v1649, %v1655
  %1660 = vset.pattern.permute.xlu0 0
  %1661 = vperm.xlu0 %1660, %v1656
  %v1662 = vpop.permute.xlu0 %1661
  %1665 = vset.pattern.permute.xlu0 0
  %1666 = vperm.xlu0 %1665, %v1657
  %v1667 = vpop.permute.xlu0 %1666
  %1670 = vset.pattern.permute.xlu0 0
  %1671 = vperm.xlu0 %1670, %v1658
  %v1672 = vpop.permute.xlu0 %1671
  %v1674 = vmul.f32 %v1278, %v1662
  %v1675 = vmul.f32 %v1279, %v1667
  %v1676 = vmul.f32 %v1280, %v1672
  %v1677 = vld [vmem:[%s8] sm:$0xff]
  %v1678 = vld [vmem:[%s8 + $0x8] sm:$0xff]
  %v1679 = vld [vmem:[%s8 + $0x10] sm:$0xf]
  %v1680 = vmul.f32 %v1632, %v1656
  %v1681 = vmul.f32 %v1633, %v1657
  %v1682 = vmul.f32 %v1634, %v1658
  %v1683 = vsub.f32 %v1677, %v1680
  %v1684 = vsub.f32 %v1678, %v1681
  %v1685 = vsub.f32 %v1679, %v1682
  %1687 = vset.pattern.permute.xlu0 0
  %1688 = vperm.xlu0 %1687, %v1683
  %v1689 = vpop.permute.xlu0 %1688
  %1692 = vset.pattern.permute.xlu0 0
  %1693 = vperm.xlu0 %1692, %v1684
  %v1694 = vpop.permute.xlu0 %1693
  %1697 = vset.pattern.permute.xlu0 0
  %1698 = vperm.xlu0 %1697, %v1685
  %v1699 = vpop.permute.xlu0 %1698
  %v1701 = vadd.f32 %v1674, %v1689
  %v1702 = vadd.f32 %v1675, %v1694
  %v1703 = vadd.f32 %v1676, %v1699
  %v1704 = vmul.f32 %v1581, %v1662
  %v1705 = vmul.f32 %v1582, %v1667
  %v1706 = vmul.f32 %v1583, %v1672
  %v1707 = vadd.f32 %v1704, %v1689
  %v1708 = vadd.f32 %v1705, %v1694
  %v1709 = vadd.f32 %v1706, %v1699
  %v1710 = vld [vmem:[%s9] sm:$0xf]
  %v1711 = vld [vmem:[%s9 + $0x4] sm:$0xf]
  %v1712 = vld [vmem:[%s9 + $0x8] sm:$0x3]
  %v1713 = vpack.c.bf16 %v1702, %v1701
  %v1714 = vpack.c.bf16 %v1703, %v1703
  %v1715 = vld [vmem:[%s10] sm:$0xff]
  %v1716 = vld [vmem:[%s10 + $0x8] sm:$0xff]
  %v1717 = vld [vmem:[%s10 + $0x10] sm:$0xf]
  %1719 = vset.pattern.permute.xlu0 0
  %1720 = vperm.xlu0 %1719, %v1715
  %v1721 = vpop.permute.xlu0 %1720
  %1724 = vset.pattern.permute.xlu0 0
  %1725 = vperm.xlu0 %1724, %v1716
  %v1726 = vpop.permute.xlu0 %1725
  %1729 = vset.pattern.permute.xlu0 0
  %1730 = vperm.xlu0 %1729, %v1717
  %v1731 = vpop.permute.xlu0 %1730
  %v1736 = vunpack.c.l.b16 %v1710
  %v1737 = vunpack.c.l.b16 %v1711
  %v1738 = vunpack.c.l.b16 %v1712
  %v1739 = vpack.c.b16 %v1737, %v1736
  %v1740 = vpack.c.b16 %v1738, %v1738
  %v1742 = vsel %vm907, %v1739, 0
  %v1745 = vsel %vm907, %v1740, 0
  %v1748 = vsel %vm93, %v1714, 0
  %1750 = vmatprep.subr.bf16.mxu0 0
  %1751 = vmatpush1.bf16.msra.mxu0 0
  %1752 = vmatprep.subr.bf16.mxu0 0
  %1753 = vmatpush1.bf16.msra.mxu0 0
  %1754 = vmatprep.subr.bf16.mxu0 0
  %1755 = vmatpush1.bf16.msra.mxu0 0
  %1756 = vmatprep.subr.bf16.mxu0 0
  %1757 = vmatpush1.bf16.msra.mxu0 0
  %1758 = vmatprep.subr.bf16.mxu0 0
  %1759 = vmatpush1.bf16.msra.mxu0 0
  %1760 = vmatprep.subr.bf16.mxu0 0
  %1761 = vmatpush1.bf16.msra.mxu0 0
  %1762 = vmatprep.subr.bf16.mxu0 0
  %1763 = vmatpush1.bf16.msra.mxu0 %v1748
  %1764 = vmatprep.subr.bf16.mxu0 0
  %1765 = vmatpush1.bf16.msra.mxu0 %v1713
  %1766 = vmatprep.subr.bf16.mxu0 0
  %1767 = vmatpush2.bf16.msra.mxu0 0
  %1768 = vmatprep.subr.bf16.mxu0 0
  %1769 = vmatpush2.bf16.msra.mxu0 0
  %1770 = vmatprep.subr.bf16.mxu0 0
  %1771 = vmatpush2.bf16.msra.mxu0 0
  %1772 = vmatprep.subr.bf16.mxu0 0
  %1773 = vmatpush2.bf16.msra.mxu0 0
  %1774 = vmatprep.subr.bf16.mxu0 0
  %1775 = vmatpush2.bf16.msra.mxu0 0
  %1776 = vmatprep.subr.bf16.mxu0 0
  %1777 = vmatpush2.bf16.msra.mxu0 0
  %1778 = vmatprep.subr.bf16.mxu0 0
  %1779 = vmatpush2.bf16.msra.mxu0 0
  %1780 = vmatprep.subr.bf16.mxu0 0
  %1781 = vmatpush2.bf16.msra.mxu0 0
  %1782 = vmatprep.mubr.bf16.mxu0 0
  %1783 = vmatmul.mubr.bf16.gmra.mxu0 %v1742
  %v1784 = vpop.f32.mrf.mxu0
  %v1785 = vadd.f32 %v1721, %v1784
  %v1786 = vpop.f32.mrf.mxu0
  %v1787 = vpop.f32.mrf.mxu0
  %v1788 = vadd.f32 %v1726, %v1787
  %v1789 = vpop.f32.mrf.mxu0
  %1790 = vmatprep.mubr.bf16.mxu0 0
  %1791 = vmatmul.mubr.bf16.gmra.mxu0 %v1745
  %v1792 = vpop.f32.mrf.mxu0
  %v1793 = vadd.f32 %v1731, %v1792
  %v1794 = vpop.f32.mrf.mxu0
  %v1795 = vpop.f32.mrf.mxu0
  %v1796 = vpop.f32.mrf.mxu0
  %1797 = vdwg.mxu0
  %v1798 = vsub.f32 0.0, %v1785
  %v1799 = vsub.f32 0.0, %v1788
  %v1800 = vsub.f32 0.0, %v1793
  %v1801 = vmul.f32 %v1798, 1.442695
  %v1802 = vpow.pop %v1801
  %v1803 = vmul.f32 %v1799, 1.442695
  %v1804 = vpow.pop %v1803
  %v1805 = vmul.f32 %v1800, 1.442695
  %v1806 = vpow.pop %v1805
  %v1807 = vadd.f32 %v1802, 1.0
  %v1808 = vadd.f32 %v1804, 1.0
  %v1809 = vadd.f32 %v1806, 1.0
  %v1810 = vrcp.pop %v1807
  %v1811 = vrcp.pop %v1808
  %v1812 = vrcp.pop %v1809
  %v1813 = vmul.f32 %v1701, %v1810
  %v1814 = vmul.f32 %v1702, %v1811
  %v1815 = vmul.f32 %v1703, %v1812
  %v1816 = vpack.c.bf16 %v1708, %v1707
  %v1817 = vpack.c.bf16 %v1709, %v1709
  %v1819 = vsel %vm93, %v1817, 0
  %1821 = vmatprep.subr.bf16.mxu0 0
  %1822 = vmatpush1.bf16.msra.mxu0 0
  %1823 = vmatprep.subr.bf16.mxu0 0
  %1824 = vmatpush1.bf16.msra.mxu0 0
  %1825 = vmatprep.subr.bf16.mxu0 0
  %1826 = vmatpush1.bf16.msra.mxu0 0
  %1827 = vmatprep.subr.bf16.mxu0 0
  %1828 = vmatpush1.bf16.msra.mxu0 0
  %1829 = vmatprep.subr.bf16.mxu0 0
  %1830 = vmatpush1.bf16.msra.mxu0 0
  %1831 = vmatprep.subr.bf16.mxu0 0
  %1832 = vmatpush1.bf16.msra.mxu0 0
  %1833 = vmatprep.subr.bf16.mxu0 0
  %1834 = vmatpush1.bf16.msra.mxu0 %v1819
  %1835 = vmatprep.subr.bf16.mxu0 0
  %1836 = vmatpush1.bf16.msra.mxu0 %v1816
  %1837 = vmatprep.subr.bf16.mxu0 0
  %1838 = vmatpush2.bf16.msra.mxu0 0
  %1839 = vmatprep.subr.bf16.mxu0 0
  %1840 = vmatpush2.bf16.msra.mxu0 0
  %1841 = vmatprep.subr.bf16.mxu0 0
  %1842 = vmatpush2.bf16.msra.mxu0 0
  %1843 = vmatprep.subr.bf16.mxu0 0
  %1844 = vmatpush2.bf16.msra.mxu0 0
  %1845 = vmatprep.subr.bf16.mxu0 0
  %1846 = vmatpush2.bf16.msra.mxu0 0
  %1847 = vmatprep.subr.bf16.mxu0 0
  %1848 = vmatpush2.bf16.msra.mxu0 0
  %1849 = vmatprep.subr.bf16.mxu0 0
  %1850 = vmatpush2.bf16.msra.mxu0 0
  %1851 = vmatprep.subr.bf16.mxu0 0
  %1852 = vmatpush2.bf16.msra.mxu0 0
  %1853 = vmatprep.mubr.bf16.mxu0 0
  %1854 = vmatmul.mubr.bf16.gmra.mxu0 %v1742
  %v1855 = vpop.f32.mrf.mxu0
  %v1856 = vadd.f32 %v1721, %v1855
  %v1857 = vpop.f32.mrf.mxu0
  %v1858 = vpop.f32.mrf.mxu0
  %v1859 = vadd.f32 %v1726, %v1858
  %v1860 = vpop.f32.mrf.mxu0
  %1861 = vmatprep.mubr.bf16.mxu0 0
  %1862 = vmatmul.mubr.bf16.gmra.mxu0 %v1745
  %v1863 = vpop.f32.mrf.mxu0
  %v1864 = vadd.f32 %v1731, %v1863
  %v1865 = vpop.f32.mrf.mxu0
  %v1866 = vpop.f32.mrf.mxu0
  %v1867 = vpop.f32.mrf.mxu0
  %1868 = vdwg.mxu0
  %v1869 = vsub.f32 0.0, %v1856
  %v1870 = vsub.f32 0.0, %v1859
  %v1871 = vsub.f32 0.0, %v1864
  %v1872 = vmul.f32 %v1869, 1.442695
  %v1873 = vpow.pop %v1872
  %v1874 = vmul.f32 %v1870, 1.442695
  %v1875 = vpow.pop %v1874
  %v1876 = vmul.f32 %v1871, 1.442695
  %v1877 = vpow.pop %v1876
  %v1878 = vadd.f32 %v1873, 1.0
  %v1879 = vadd.f32 %v1875, 1.0
  %v1880 = vadd.f32 %v1877, 1.0
  %v1881 = vrcp.pop %v1878
  %v1882 = vrcp.pop %v1879
  %v1883 = vrcp.pop %v1880
  %v1884 = vmul.f32 %v1707, %v1881
  %v1885 = vmul.f32 %v1708, %v1882
  %v1886 = vmul.f32 %v1709, %v1883
  %v1887 = vld [vmem:[%s11] sm:$0xf]
  %v1888 = vld [vmem:[%s11 + $0x4] sm:$0xf]
  %v1889 = vld [vmem:[%s11 + $0x8] sm:$0x3]
  %v1890 = vld [vmem:[%s12] sm:$0xf]
  %v1891 = vld [vmem:[%s12 + $0x4] sm:$0xf]
  %v1892 = vld [vmem:[%s12 + $0x8] sm:$0x3]
  %v1893 = vpack.c.bf16 %v1814, %v1813
  %v1894 = vpack.c.bf16 %v1815, %v1815
  %v1898 = vunpack.c.l.b16 %v1890
  %v1899 = vunpack.c.l.b16 %v1891
  %v1900 = vunpack.c.l.b16 %v1892
  %v1901 = vpack.c.b16 %v1899, %v1898
  %v1902 = vpack.c.b16 %v1900, %v1900
  %v1904 = vsel %vm907, %v1901, 0
  %v1907 = vsel %vm907, %v1902, 0
  %v1910 = vsel %vm93, %v1894, 0
  %1912 = vmatprep.subr.bf16.mxu0 0
  %1913 = vmatpush1.bf16.msra.mxu0 0
  %1914 = vmatprep.subr.bf16.mxu0 0
  %1915 = vmatpush1.bf16.msra.mxu0 0
  %1916 = vmatprep.subr.bf16.mxu0 0
  %1917 = vmatpush1.bf16.msra.mxu0 0
  %1918 = vmatprep.subr.bf16.mxu0 0
  %1919 = vmatpush1.bf16.msra.mxu0 0
  %1920 = vmatprep.subr.bf16.mxu0 0
  %1921 = vmatpush1.bf16.msra.mxu0 0
  %1922 = vmatprep.subr.bf16.mxu0 0
  %1923 = vmatpush1.bf16.msra.mxu0 0
  %1924 = vmatprep.subr.bf16.mxu0 0
  %1925 = vmatpush1.bf16.msra.mxu0 %v1910
  %1926 = vmatprep.subr.bf16.mxu0 0
  %1927 = vmatpush1.bf16.msra.mxu0 %v1893
  %1928 = vmatprep.subr.bf16.mxu0 0
  %1929 = vmatpush2.bf16.msra.mxu0 0
  %1930 = vmatprep.subr.bf16.mxu0 0
  %1931 = vmatpush2.bf16.msra.mxu0 0
  %1932 = vmatprep.subr.bf16.mxu0 0
  %1933 = vmatpush2.bf16.msra.mxu0 0
  %1934 = vmatprep.subr.bf16.mxu0 0
  %1935 = vmatpush2.bf16.msra.mxu0 0
  %1936 = vmatprep.subr.bf16.mxu0 0
  %1937 = vmatpush2.bf16.msra.mxu0 0
  %1938 = vmatprep.subr.bf16.mxu0 0
  %1939 = vmatpush2.bf16.msra.mxu0 0
  %1940 = vmatprep.subr.bf16.mxu0 0
  %1941 = vmatpush2.bf16.msra.mxu0 0
  %1942 = vmatprep.subr.bf16.mxu0 0
  %1943 = vmatpush2.bf16.msra.mxu0 0
  %1944 = vmatprep.mubr.bf16.mxu0 0
  %1945 = vmatmul.mubr.bf16.gmra.mxu0 %v1904
  %v1946 = vpop.f32.mrf.mxu0
  %v1947 = vadd.f32 0.0, %v1946
  %v1948 = vpop.f32.mrf.mxu0
  %v1949 = vpop.f32.mrf.mxu0
  %v1950 = vadd.f32 0.0, %v1949
  %v1951 = vpop.f32.mrf.mxu0
  %1952 = vmatprep.mubr.bf16.mxu0 0
  %1953 = vmatmul.mubr.bf16.gmra.mxu0 %v1907
  %v1954 = vpop.f32.mrf.mxu0
  %v1955 = vadd.f32 0.0, %v1954
  %v1956 = vpop.f32.mrf.mxu0
  %v1957 = vpop.f32.mrf.mxu0
  %v1958 = vpop.f32.mrf.mxu0
  %1959 = vdwg.mxu0
  %v1963 = vunpack.c.l.b16 %v1887
  %v1964 = vunpack.c.l.b16 %v1888
  %v1965 = vunpack.c.l.b16 %v1889
  %v1966 = vpack.c.b16 %v1964, %v1963
  %v1967 = vpack.c.b16 %v1965, %v1965
  %v1969 = vsel %vm86, %v1966, 0
  %v1972 = vsel %vm86, %v1967, 0
  %1974 = vmatprep.subr.bf16.mxu0 0
  %1975 = vmatpush1.bf16.msra.mxu0 0
  %1976 = vmatprep.subr.bf16.mxu0 0
  %1977 = vmatpush1.bf16.msra.mxu0 0
  %1978 = vmatprep.subr.bf16.mxu0 0
  %1979 = vmatpush1.bf16.msra.mxu0 0
  %1980 = vmatprep.subr.bf16.mxu0 0
  %1981 = vmatpush1.bf16.msra.mxu0 0
  %1982 = vmatprep.subr.bf16.mxu0 0
  %1983 = vmatpush1.bf16.msra.mxu0 0
  %1984 = vmatprep.subr.bf16.mxu0 0
  %1985 = vmatpush1.bf16.msra.mxu0 0
  %1986 = vmatprep.subr.bf16.mxu0 0
  %1987 = vmatpush1.bf16.msra.mxu0 0
  %1988 = vmatprep.subr.bf16.mxu0 0
  %1989 = vmatpush1.bf16.msra.mxu0 %v230
  %1990 = vmatprep.subr.bf16.mxu0 0
  %1991 = vmatpush2.bf16.msra.mxu0 0
  %1992 = vmatprep.subr.bf16.mxu0 0
  %1993 = vmatpush2.bf16.msra.mxu0 0
  %1994 = vmatprep.subr.bf16.mxu0 0
  %1995 = vmatpush2.bf16.msra.mxu0 0
  %1996 = vmatprep.subr.bf16.mxu0 0
  %1997 = vmatpush2.bf16.msra.mxu0 0
  %1998 = vmatprep.subr.bf16.mxu0 0
  %1999 = vmatpush2.bf16.msra.mxu0 0
  %2000 = vmatprep.subr.bf16.mxu0 0
  %2001 = vmatpush2.bf16.msra.mxu0 0
  %2002 = vmatprep.subr.bf16.mxu0 0
  %2003 = vmatpush2.bf16.msra.mxu0 0
  %2004 = vmatprep.subr.bf16.mxu0 0
  %2005 = vmatpush2.bf16.msra.mxu0 0
  %2006 = vmatprep.mubr.bf16.mxu0 0
  %2007 = vmatmul.mubr.bf16.gmra.mxu0 %v1969
  %v2008 = vpop.f32.mrf.mxu0
  %v2009 = vadd.f32 %v1947, %v2008
  %v2010 = vpop.f32.mrf.mxu0
  %v2011 = vpop.f32.mrf.mxu0
  %v2012 = vadd.f32 %v1950, %v2011
  %v2013 = vpop.f32.mrf.mxu0
  %2014 = vmatprep.mubr.bf16.mxu0 0
  %2015 = vmatmul.mubr.bf16.gmra.mxu0 %v1972
  %v2016 = vpop.f32.mrf.mxu0
  %v2017 = vadd.f32 %v1955, %v2016
  %v2018 = vpop.f32.mrf.mxu0
  %v2019 = vpop.f32.mrf.mxu0
  %v2020 = vpop.f32.mrf.mxu0
  %2021 = vdwg.mxu0
  %v2022 = vld [vmem:[%s13] sm:$0xff]
  %v2023 = vld [vmem:[%s13 + $0x8] sm:$0xff]
  %v2024 = vld [vmem:[%s13 + $0x10] sm:$0xf]
  %2026 = vset.pattern.permute.xlu0 0
  %2027 = vperm.xlu0 %2026, %v2022
  %v2028 = vpop.permute.xlu0 %2027
  %2031 = vset.pattern.permute.xlu0 0
  %2032 = vperm.xlu0 %2031, %v2023
  %v2033 = vpop.permute.xlu0 %2032
  %2036 = vset.pattern.permute.xlu0 0
  %2037 = vperm.xlu0 %2036, %v2024
  %v2038 = vpop.permute.xlu0 %2037
  %v2040 = vadd.f32 %v2009, %v2028
  %v2041 = vadd.f32 %v2012, %v2033
  %v2042 = vadd.f32 %v2017, %v2038
  %v2043 = vpack.c.bf16 %v1885, %v1884
  %v2044 = vpack.c.bf16 %v1886, %v1886
  %v2046 = vsel %vm93, %v2044, 0
  %2048 = vmatprep.subr.bf16.mxu0 0
  %2049 = vmatpush1.bf16.msra.mxu0 0
  %2050 = vmatprep.subr.bf16.mxu0 0
  %2051 = vmatpush1.bf16.msra.mxu0 0
  %2052 = vmatprep.subr.bf16.mxu0 0
  %2053 = vmatpush1.bf16.msra.mxu0 0
  %2054 = vmatprep.subr.bf16.mxu0 0
  %2055 = vmatpush1.bf16.msra.mxu0 0
  %2056 = vmatprep.subr.bf16.mxu0 0
  %2057 = vmatpush1.bf16.msra.mxu0 0
  %2058 = vmatprep.subr.bf16.mxu0 0
  %2059 = vmatpush1.bf16.msra.mxu0 0
  %2060 = vmatprep.subr.bf16.mxu0 0
  %2061 = vmatpush1.bf16.msra.mxu0 %v2046
  %2062 = vmatprep.subr.bf16.mxu0 0
  %2063 = vmatpush1.bf16.msra.mxu0 %v2043
  %2064 = vmatprep.subr.bf16.mxu0 0
  %2065 = vmatpush2.bf16.msra.mxu0 0
  %2066 = vmatprep.subr.bf16.mxu0 0
  %2067 = vmatpush2.bf16.msra.mxu0 0
  %2068 = vmatprep.subr.bf16.mxu0 0
  %2069 = vmatpush2.bf16.msra.mxu0 0
  %2070 = vmatprep.subr.bf16.mxu0 0
  %2071 = vmatpush2.bf16.msra.mxu0 0
  %2072 = vmatprep.subr.bf16.mxu0 0
  %2073 = vmatpush2.bf16.msra.mxu0 0
  %2074 = vmatprep.subr.bf16.mxu0 0
  %2075 = vmatpush2.bf16.msra.mxu0 0
  %2076 = vmatprep.subr.bf16.mxu0 0
  %2077 = vmatpush2.bf16.msra.mxu0 0
  %2078 = vmatprep.subr.bf16.mxu0 0
  %2079 = vmatpush2.bf16.msra.mxu0 0
  %2080 = vmatprep.mubr.bf16.mxu0 0
  %2081 = vmatmul.mubr.bf16.gmra.mxu0 %v1904
  %v2082 = vpop.f32.mrf.mxu0
  %v2083 = vadd.f32 0.0, %v2082
  %v2084 = vpop.f32.mrf.mxu0
  %v2085 = vpop.f32.mrf.mxu0
  %v2086 = vadd.f32 0.0, %v2085
  %v2087 = vpop.f32.mrf.mxu0
  %2088 = vmatprep.mubr.bf16.mxu0 0
  %2089 = vmatmul.mubr.bf16.gmra.mxu0 %v1907
  %v2090 = vpop.f32.mrf.mxu0
  %v2091 = vadd.f32 0.0, %v2090
  %v2092 = vpop.f32.mrf.mxu0
  %v2093 = vpop.f32.mrf.mxu0
  %v2094 = vpop.f32.mrf.mxu0
  %2095 = vdwg.mxu0
  %2096 = vmatprep.subr.bf16.mxu0 0
  %2097 = vmatpush1.bf16.msra.mxu0 0
  %2098 = vmatprep.subr.bf16.mxu0 0
  %2099 = vmatpush1.bf16.msra.mxu0 0
  %2100 = vmatprep.subr.bf16.mxu0 0
  %2101 = vmatpush1.bf16.msra.mxu0 0
  %2102 = vmatprep.subr.bf16.mxu0 0
  %2103 = vmatpush1.bf16.msra.mxu0 0
  %2104 = vmatprep.subr.bf16.mxu0 0
  %2105 = vmatpush1.bf16.msra.mxu0 0
  %2106 = vmatprep.subr.bf16.mxu0 0
  %2107 = vmatpush1.bf16.msra.mxu0 0
  %2108 = vmatprep.subr.bf16.mxu0 0
  %2109 = vmatpush1.bf16.msra.mxu0 0
  %2110 = vmatprep.subr.bf16.mxu0 0
  %2111 = vmatpush1.bf16.msra.mxu0 %v566
  %2112 = vmatprep.subr.bf16.mxu0 0
  %2113 = vmatpush2.bf16.msra.mxu0 0
  %2114 = vmatprep.subr.bf16.mxu0 0
  %2115 = vmatpush2.bf16.msra.mxu0 0
  %2116 = vmatprep.subr.bf16.mxu0 0
  %2117 = vmatpush2.bf16.msra.mxu0 0
  %2118 = vmatprep.subr.bf16.mxu0 0
  %2119 = vmatpush2.bf16.msra.mxu0 0
  %2120 = vmatprep.subr.bf16.mxu0 0
  %2121 = vmatpush2.bf16.msra.mxu0 0
  %2122 = vmatprep.subr.bf16.mxu0 0
  %2123 = vmatpush2.bf16.msra.mxu0 0
  %2124 = vmatprep.subr.bf16.mxu0 0
  %2125 = vmatpush2.bf16.msra.mxu0 0
  %2126 = vmatprep.subr.bf16.mxu0 0
  %2127 = vmatpush2.bf16.msra.mxu0 0
  %2128 = vmatprep.mubr.bf16.mxu0 0
  %2129 = vmatmul.mubr.bf16.gmra.mxu0 %v1969
  %v2130 = vpop.f32.mrf.mxu0
  %v2131 = vadd.f32 %v2083, %v2130
  %v2132 = vpop.f32.mrf.mxu0
  %v2133 = vpop.f32.mrf.mxu0
  %v2134 = vadd.f32 %v2086, %v2133
  %v2135 = vpop.f32.mrf.mxu0
  %2136 = vmatprep.mubr.bf16.mxu0 0
  %2137 = vmatmul.mubr.bf16.gmra.mxu0 %v1972
  %v2138 = vpop.f32.mrf.mxu0
  %v2139 = vadd.f32 %v2091, %v2138
  %v2140 = vpop.f32.mrf.mxu0
  %v2141 = vpop.f32.mrf.mxu0
  %v2142 = vpop.f32.mrf.mxu0
  %2143 = vdwg.mxu0
  %v2144 = vadd.f32 %v2131, %v2028
  %v2145 = vadd.f32 %v2134, %v2033
  %v2146 = vadd.f32 %v2139, %v2038
  %v2147 = vsel %vm736, %v2040, 0.0
  %2148 = vadd.xlane.f32.xlu0 %v2147
  %v2149 = vpop.xlane.xlu0 %2148
  %v2150 = vsel %vm736, %v2041, 0.0
  %2151 = vadd.xlane.f32.xlu0 %v2150
  %v2152 = vpop.xlane.xlu0 %2151
  %v2153 = vsel %vm743, %v2042, 0.0
  %2154 = vadd.xlane.f32.xlu0 %v2153
  %v2155 = vpop.xlane.xlu0 %2154
  %v2156 = vmul.f32 %v2040, %v2040
  %v2157 = vmul.f32 %v2041, %v2041
  %v2158 = vmul.f32 %v2042, %v2042
  %v2159 = vsel %vm736, %v2156, 0.0
  %2160 = vadd.xlane.f32.xlu0 %v2159
  %v2161 = vpop.xlane.xlu0 %2160
  %v2162 = vsel %vm736, %v2157, 0.0
  %2163 = vadd.xlane.f32.xlu0 %v2162
  %v2164 = vpop.xlane.xlu0 %2163
  %v2165 = vsel %vm743, %v2158, 0.0
  %2166 = vadd.xlane.f32.xlu0 %v2165
  %v2167 = vpop.xlane.xlu0 %2166
  %v2168 = vsel %vm736, %v2144, 0.0
  %2169 = vadd.xlane.f32.xlu0 %v2168
  %v2170 = vpop.xlane.xlu0 %2169
  %v2171 = vsel %vm736, %v2145, 0.0
  %2172 = vadd.xlane.f32.xlu0 %v2171
  %v2173 = vpop.xlane.xlu0 %2172
  %v2174 = vsel %vm743, %v2146, 0.0
  %2175 = vadd.xlane.f32.xlu0 %v2174
  %v2176 = vpop.xlane.xlu0 %2175
  %v2177 = vmul.f32 %v2144, %v2144
  %v2178 = vmul.f32 %v2145, %v2145
  %v2179 = vmul.f32 %v2146, %v2146
  %v2180 = vsel %vm736, %v2177, 0.0
  %2181 = vadd.xlane.f32.xlu0 %v2180
  %v2182 = vpop.xlane.xlu0 %2181
  %v2183 = vsel %vm736, %v2178, 0.0
  %2184 = vadd.xlane.f32.xlu0 %v2183
  %v2185 = vpop.xlane.xlu0 %2184
  %v2186 = vsel %vm743, %v2179, 0.0
  %2187 = vadd.xlane.f32.xlu0 %v2186
  %v2188 = vpop.xlane.xlu0 %2187
  %v2189 = vadd.f32 %v2149, %v2170
  %v2190 = vadd.f32 %v2152, %v2173
  %v2191 = vadd.f32 %v2155, %v2176
  %v2192 = vadd.f32 %v2161, %v2182
  %v2193 = vadd.f32 %v2164, %v2185
  %v2194 = vadd.f32 %v2167, %v2188
  %v2195 = vmul.f32 %v2189, 0.03125
  %v2196 = vmul.f32 %v2190, 0.03125
  %v2197 = vmul.f32 %v2191, 0.03125
  %v2198 = vmul.f32 %v2192, 0.03125
  %v2199 = vmul.f32 %v2193, 0.03125
  %v2200 = vmul.f32 %v2194, 0.03125
  %v2201 = vmul.f32 %v2195, %v2195
  %v2202 = vmul.f32 %v2196, %v2196
  %v2203 = vmul.f32 %v2197, %v2197
  %v2204 = vsub.f32 %v2198, %v2201
  %v2205 = vsub.f32 %v2199, %v2202
  %v2206 = vsub.f32 %v2200, %v2203
  %v2207 = vmax.f32 %v2204, 0.0
  %v2208 = vmax.f32 %v2205, 0.0
  %v2209 = vmax.f32 %v2206, 0.0
  %v2210 = vld [vmem:[%s14] sm:$0xff]
  %v2211 = vld [vmem:[%s14 + $0x8] sm:$0xff]
  %v2212 = vld [vmem:[%s14 + $0x10] sm:$0xf]
  %v2213 = vadd.f32 %v2207, 1e-05
  %v2214 = vadd.f32 %v2208, 1e-05
  %v2215 = vadd.f32 %v2209, 1e-05
  %v2216 = vrsqrt.pop %v2213
  %v2217 = vrsqrt.pop %v2214
  %v2218 = vrsqrt.pop %v2215
  %v2219 = vmul.f32 %v2210, %v2216
  %v2220 = vmul.f32 %v2211, %v2217
  %v2221 = vmul.f32 %v2212, %v2218
  %2223 = vset.pattern.permute.xlu0 0
  %2224 = vperm.xlu0 %2223, %v2219
  %v2225 = vpop.permute.xlu0 %2224
  %2228 = vset.pattern.permute.xlu0 0
  %2229 = vperm.xlu0 %2228, %v2220
  %v2230 = vpop.permute.xlu0 %2229
  %2233 = vset.pattern.permute.xlu0 0
  %2234 = vperm.xlu0 %2233, %v2221
  %v2235 = vpop.permute.xlu0 %2234
  %v2237 = vmul.f32 %v2040, %v2225
  %v2238 = vmul.f32 %v2041, %v2230
  %v2239 = vmul.f32 %v2042, %v2235
  %v2240 = vld [vmem:[%s15] sm:$0xff]
  %v2241 = vld [vmem:[%s15 + $0x8] sm:$0xff]
  %v2242 = vld [vmem:[%s15 + $0x10] sm:$0xf]
  %v2243 = vmul.f32 %v2195, %v2219
  %v2244 = vmul.f32 %v2196, %v2220
  %v2245 = vmul.f32 %v2197, %v2221
  %v2246 = vsub.f32 %v2240, %v2243
  %v2247 = vsub.f32 %v2241, %v2244
  %v2248 = vsub.f32 %v2242, %v2245
  %2250 = vset.pattern.permute.xlu0 0
  %2251 = vperm.xlu0 %2250, %v2246
  %v2252 = vpop.permute.xlu0 %2251
  %2255 = vset.pattern.permute.xlu0 0
  %2256 = vperm.xlu0 %2255, %v2247
  %v2257 = vpop.permute.xlu0 %2256
  %2260 = vset.pattern.permute.xlu0 0
  %2261 = vperm.xlu0 %2260, %v2248
  %v2262 = vpop.permute.xlu0 %2261
  %v2264 = vadd.f32 %v2237, %v2252
  %v2265 = vadd.f32 %v2238, %v2257
  %v2266 = vadd.f32 %v2239, %v2262
  %v2267 = vmax.f32 %v2264, 0.0
  %v2268 = vmax.f32 %v2265, 0.0
  %v2269 = vmax.f32 %v2266, 0.0
  %2270 = vst.msk [vmem:[%s16] sm:$0xff] %vm736, %v2267
  %2271 = vst.msk [vmem:[%s16 + $0x8] sm:$0xff] %vm736, %v2268
  %2272 = vst.msk [vmem:[%s16 + $0x10] sm:$0xf] %vm743, %v2269
  %v2273 = vld [vmem:[%s14] sm:$0xff]
  %v2274 = vld [vmem:[%s14 + $0x8] sm:$0xff]
  %v2275 = vld [vmem:[%s14 + $0x10] sm:$0xf]
  %v2276 = vmul.f32 %v2273, %v2216
  %v2277 = vmul.f32 %v2274, %v2217
  %v2278 = vmul.f32 %v2275, %v2218
  %2280 = vset.pattern.permute.xlu0 0
  %2281 = vperm.xlu0 %2280, %v2276
  %v2282 = vpop.permute.xlu0 %2281
  %2285 = vset.pattern.permute.xlu0 0
  %2286 = vperm.xlu0 %2285, %v2277
  %v2287 = vpop.permute.xlu0 %2286
  %2290 = vset.pattern.permute.xlu0 0
  %2291 = vperm.xlu0 %2290, %v2278
  %v2292 = vpop.permute.xlu0 %2291
  %v2294 = vmul.f32 %v2144, %v2282
  %v2295 = vmul.f32 %v2145, %v2287
  %v2296 = vmul.f32 %v2146, %v2292
  %v2297 = vld [vmem:[%s15] sm:$0xff]
  %v2298 = vld [vmem:[%s15 + $0x8] sm:$0xff]
  %v2299 = vld [vmem:[%s15 + $0x10] sm:$0xf]
  %v2300 = vmul.f32 %v2195, %v2276
  %v2301 = vmul.f32 %v2196, %v2277
  %v2302 = vmul.f32 %v2197, %v2278
  %v2303 = vsub.f32 %v2297, %v2300
  %v2304 = vsub.f32 %v2298, %v2301
  %v2305 = vsub.f32 %v2299, %v2302
  %2307 = vset.pattern.permute.xlu0 0
  %2308 = vperm.xlu0 %2307, %v2303
  %v2309 = vpop.permute.xlu0 %2308
  %2312 = vset.pattern.permute.xlu0 0
  %2313 = vperm.xlu0 %2312, %v2304
  %v2314 = vpop.permute.xlu0 %2313
  %2317 = vset.pattern.permute.xlu0 0
  %2318 = vperm.xlu0 %2317, %v2305
  %v2319 = vpop.permute.xlu0 %2318
  %v2321 = vadd.f32 %v2294, %v2309
  %v2322 = vadd.f32 %v2295, %v2314
  %v2323 = vadd.f32 %v2296, %v2319
  %v2324 = vmax.f32 %v2321, 0.0
  %v2325 = vmax.f32 %v2322, 0.0
  %v2326 = vmax.f32 %v2323, 0.0
  %s2327 = scalar_lea.vmem %s16, 24
  %2328 = vst.msk [vmem:[%s2327] sm:$0xff] %vm736, %v2324
  %2329 = vst.msk [vmem:[%s2327 + $0x8] sm:$0xff] %vm736, %v2325
  %2330 = vst.msk [vmem:[%s2327 + $0x10] sm:$0xf] %vm743, %v2326
  // Predicated region
  $region66: #{tpu_custom_call.1} parent=0 // pred_check
    _
  $region67: #{tpu_custom_call.1} parent=0 // pred_check_branch
    %2332 = sbr.rel (0) target = $region69
  $region68: #{tpu_custom_call.1} parent=0 // pred_region
    _
  $region69: #{tpu_custom_call.1} parent=0 // pred_fallthru
    _
  // Predicated region
  $region70: #{tpu_custom_call.1} parent=0 // pred_check
    _
  $region71: #{tpu_custom_call.1} parent=0 // pred_check_branch
    %2334 = sbr.rel (0) target = $region73
  $region72: #{tpu_custom_call.1} parent=0 // pred_region
    _
  $region73: #{tpu_custom_call.1} parent=0 // pred_fallthru
    _

</llo_original>
